<compile_context>
chip_gen: v6e
topology: v6e:2x2x1
jax: 0.10.0
libtpu: 0.0.40
codegen_flags: <defaults>
</compile_context>

<pallas_src>
import jax
import jax.numpy as jnp
from jax import lax
from jax.experimental import pallas as pl
from jax.experimental.pallas import tpu as pltpu

HIDDEN = 50          # logical hidden size (matches the PyTorch module)
HP = 64              # padded hidden size: 4*HP = 256 lanes = 2 full vreg columns
INPUT = 1


def lstm_linear_kernel(x_ref, w_ih_ref, w_hh_ref, b_ref, w_lin_ref, b_lin_ref,
                       out_ref, pre_ref, h_all_ref):
    """Full LSTM recurrence + deferred output projection, time-major, gridless."""
    T, B = x_ref.shape               # (T, Bp)
    Hp = w_hh_ref.shape[0]           # padded hidden

    # Fused recurrent weights (bf16, ~8 vregs) stay live across all steps.
    w_hh = w_hh_ref[...]             # (Hp, 4*Hp) bf16

    # (1) Input contribution for every timestep in one vectorized op, off the
    #     serial critical path: (T,Bp,1)*(1,1,4Hp)+(1,1,4Hp) -> (T,Bp,4Hp).
    pre_ref[...] = x_ref[...][:, :, None] * w_ih_ref[...] + b_ref[...]

    h0 = jnp.zeros((B, Hp), jnp.float32)
    c0 = jnp.zeros((B, Hp), jnp.float32)

    def step(t, carry):
        h, c = carry
        # (2) single fused matmul for all four gates: bf16 operands, f32 acc.
        z = pre_ref[t] + jnp.dot(h.astype(jnp.bfloat16), w_hh,
                                 preferred_element_type=jnp.float32)   # (Bp, 4Hp) f32
        # (3) gates in torch order (i, f, g, o); slices aligned to 128-lane tiles:
        #     sigmoid over lanes [0,128) (i,f), tanh over [128,192) (g),
        #     o-gate sigmoid over [192,256) issued after c_new (off the c-chain).
        sig_if = jax.nn.sigmoid(z[:, :2 * Hp])
        g = jnp.tanh(z[:, 2 * Hp:3 * Hp])
        i = sig_if[:, :Hp]
        f = sig_if[:, Hp:]
        c_new = f * c + i * g
        o = jax.nn.sigmoid(z[:, 3 * Hp:])
        h_new = o * jnp.tanh(c_new)
        # (4) defer the output projection: just record h_t.
        h_all_ref[t] = h_new
        return (h_new, c_new)

    # (5) fully unrolled recurrence (T is small & static) so the scheduler can
    #     overlap the next step's matmul push with the current activation tail.
    lax.fori_loop(0, T, step, (h0, c0), unroll=True)

    # (6) Linear(50 -> 1) applied once to all timesteps; single lane-dense
    #     2-D bulk store (no trailing dim of 1).
    y = jnp.sum(h_all_ref[...] * w_lin_ref[...], axis=-1)        # (T, Bp)
    out_ref[...] = (y + b_lin_ref[...]).astype(out_ref.dtype)


def air_model_forward(x, packed):
    """x: (B, T, 1) batch_first, like the PyTorch module. Returns (B, T, 1)."""
    w_ih_all, w_hh_all, b_all, w_lin, b_lin = packed
    B, T, _ = x.shape
    Hp = w_hh_all.shape[0]
    Bp = ((B + 7) // 8) * 8                                   # pad batch to sublane tile

    x_tm = jnp.transpose(x[..., 0], (1, 0)).astype(jnp.float32)   # (T, B) time-major
    x_tm = jnp.pad(x_tm, ((0, 0), (0, Bp - B)))                   # (T, Bp) lane-dense

    vmem = pl.BlockSpec(memory_space=pltpu.MemorySpace.VMEM)
    out_tm = pl.pallas_call(
        lstm_linear_kernel,
        out_shape=jax.ShapeDtypeStruct((T, Bp), jnp.float32),     # lane-dense 2-D output
        in_specs=[vmem] * 6,
        out_specs=vmem,
        scratch_shapes=[
            pltpu.VMEM((T, Bp, 4 * Hp), jnp.float32),   # precomputed input term
            pltpu.VMEM((T, Bp, Hp), jnp.float32),       # hidden states for deferred projection
        ],
    )(x_tm, w_ih_all, w_hh_all, b_all, w_lin, b_lin)

    return jnp.transpose(out_tm[:, :B], (1, 0))[:, :, None]      # (B, T, 1)


def init_raw_params(key):
    """Raw PyTorch-layout parameters (deterministic, default uniform bounds)."""
    k_ih, k_hh, k_bih, k_bhh, k_lw, k_lb = jax.random.split(key, 6)
    bound = 1.0 / (HIDDEN ** 0.5)
    w_ih = jax.random.uniform(k_ih, (4 * HIDDEN, INPUT), jnp.float32, -bound, bound)
    w_hh = jax.random.uniform(k_hh, (4 * HIDDEN, HIDDEN), jnp.float32, -bound, bound)
    b_ih = jax.random.uniform(k_bih, (4 * HIDDEN,), jnp.float32, -bound, bound)
    b_hh = jax.random.uniform(k_bhh, (4 * HIDDEN,), jnp.float32, -bound, bound)
    lin_w = jax.random.uniform(k_lw, (1, HIDDEN), jnp.float32, -bound, bound)
    lin_b = jax.random.uniform(k_lb, (1,), jnp.float32, -bound, bound)
    return w_ih, w_hh, b_ih, b_hh, lin_w, lin_b


def pack_params(raw):
    """Fuse / pad the raw weights into the kernel layout.

    Gate order stays the torch order (i, f, g, o) -> 128-lane-aligned
    activation slices.  Hidden is zero-padded 50 -> HP; padding is exact
    (padded gate pre-activations are 0, so padded h/c stay 0 forever, and
    padded w_hh rows / w_lin columns are 0).  W_hh is cast to bf16 (single-pass
    MXU operand); everything else stays f32.
    """
    w_ih, w_hh, b_ih, b_hh, lin_w, lin_b = raw
    H, Hp = HIDDEN, HP
    pad_h = Hp - H

    def gate(m, k):
        return m[k * H:(k + 1) * H]

    # (1, 1, 4Hp): input weights (input_size == 1 -> one scalar per gate unit).
    w_ih_all = jnp.concatenate(
        [jnp.pad(gate(w_ih, k)[:, 0], (0, pad_h)) for k in range(4)]
    ).reshape(1, 1, 4 * Hp).astype(jnp.float32)
    # (1, 1, 4Hp): fused bias b_ih + b_hh.
    b_all = jnp.concatenate(
        [jnp.pad(gate(b_ih, k) + gate(b_hh, k), (0, pad_h)) for k in range(4)]
    ).reshape(1, 1, 4 * Hp).astype(jnp.float32)
    # (Hp, 4Hp): fused recurrent weights, pre-transposed for h @ W, bf16 operand.
    w_hh_all = jnp.concatenate(
        [jnp.pad(gate(w_hh, k).T, ((0, pad_h), (0, pad_h))) for k in range(4)],
        axis=1).astype(jnp.bfloat16)
    # (1, 1, Hp) / (1, 1): output projection.
    w_lin = jnp.pad(lin_w, ((0, 0), (0, pad_h))).reshape(1, 1, Hp).astype(jnp.float32)
    b_lin = lin_b.reshape(1, 1).astype(jnp.float32)
    return w_ih_all, w_hh_all, b_all, w_lin, b_lin


def _ref_forward(x, raw, bf16_dot):
    """Pure-JAX reference (PyTorch layout / gate order) via lax.scan.

    bf16_dot=False -> exact f32 module semantics.
    bf16_dot=True  -> matches the kernel's matmul precision (bf16 operands,
                      f32 accumulation) for a tight correctness check.
    """
    w_ih, w_hh, b_ih, b_hh, lin_w, lin_b = raw
    H = HIDDEN
    B = x.shape[0]
    b = b_ih + b_hh
    w_hh_op = w_hh.astype(jnp.bfloat16) if bf16_dot else w_hh

    def step(carry, x_t):
        h, c = carry
        h_op = h.astype(jnp.bfloat16) if bf16_dot else h
        z = (x_t @ w_ih.T + b
             + jnp.dot(h_op, w_hh_op.T, preferred_element_type=jnp.float32))
        i = jax.nn.sigmoid(z[:, 0 * H:1 * H])
        f = jax.nn.sigmoid(z[:, 1 * H:2 * H])
        g = jnp.tanh(z[:, 2 * H:3 * H])
        o = jax.nn.sigmoid(z[:, 3 * H:4 * H])
        c_new = f * c + i * g
        h_new = o * jnp.tanh(c_new)
        y = h_new @ lin_w.T + lin_b
        return (h_new, c_new), y

    h0 = jnp.zeros((B, H), jnp.float32)
    c0 = jnp.zeros((B, H), jnp.float32)
    _, ys = lax.scan(step, (h0, c0), jnp.transpose(x, (1, 0, 2)))
    return jnp.transpose(ys, (1, 0, 2))


if __name__ == "__main__":
    key = jax.random.PRNGKey(0)
    k_param, k_x1, k_x2 = jax.random.split(key, 3)

    raw = init_raw_params(k_param)
    packed = pack_params(raw)

    # Primary small shape (B=2, T=8) plus a second shape exercising batch padding.
    for (B, T), kx in (((2, 8), k_x1), ((3, 20), k_x2)):
        x = jax.random.normal(kx, (B, T, 1), jnp.float32)   # batch_first, input_size=1
        out = jax.block_until_ready(air_model_forward(x, packed))
        assert out.shape == (B, T, 1), out.shape

        # Tight check against a matched-precision (bf16-dot) reference.
        ref_bf16 = jax.block_until_ready(_ref_forward(x, raw, bf16_dot=True))
        err_bf16 = float(jnp.max(jnp.abs(out - ref_bf16)))
        assert err_bf16 < 2e-4, f"B={B} T={T} matched-precision max abs err {err_bf16}"

        # Deliberately loosened check against the exact f32 module reference
        # (bf16 MXU operands accumulate small rounding error over T steps).
        ref_f32 = jax.block_until_ready(_ref_forward(x, raw, bf16_dot=False))
        err_f32 = float(jnp.max(jnp.abs(out - ref_f32)))
        assert err_f32 < 5e-2, f"B={B} T={T} vs-f32 max abs err {err_f32}"

    print("KERNEL_OK")
</pallas_src>

<mosaic_0001>
module attributes {stable_mosaic.version = 11 : i64} {
  func.func @lstm_linear_kernel(%arg0: memref<8x8xf32, #tpu.memory_space<vmem>>, %arg1: memref<1x1x256xf32, #tpu.memory_space<vmem>>, %arg2: memref<64x256xbf16, #tpu.memory_space<vmem>>, %arg3: memref<1x1x256xf32, #tpu.memory_space<vmem>>, %arg4: memref<1x1x64xf32, #tpu.memory_space<vmem>>, %arg5: memref<1x1xf32, #tpu.memory_space<vmem>>, %arg6: memref<8x8xf32, #tpu.memory_space<vmem>>, %arg7: memref<8x8x256xf32, #tpu.memory_space<vmem>>, %arg8: memref<8x8x64xf32, #tpu.memory_space<vmem>>) attributes {dimension_semantics = [], scalar_prefetch = 0 : i64, scratch_operands = 2 : i64, tpu.core_type = #tpu.core_type<tc>} {
    %c0 = arith.constant 0 : index
    %c0_0 = arith.constant 0 : index
    %0 = vector.load %arg2[%c0, %c0_0] : memref<64x256xbf16, #tpu.memory_space<vmem>>, vector<64x256xbf16>
    %c0_1 = arith.constant 0 : index
    %c0_2 = arith.constant 0 : index
    %1 = vector.load %arg0[%c0_1, %c0_2] : memref<8x8xf32, #tpu.memory_space<vmem>>, vector<8x8xf32>
    %2 = vector.shape_cast %1 : vector<8x8xf32> to vector<8x8x1xf32>
    %c0_3 = arith.constant 0 : index
    %c0_4 = arith.constant 0 : index
    %c0_5 = arith.constant 0 : index
    %3 = vector.load %arg1[%c0_3, %c0_4, %c0_5] : memref<1x1x256xf32, #tpu.memory_space<vmem>>, vector<1x1x256xf32>
    %4 = vector.broadcast %2 : vector<8x8x1xf32> to vector<8x8x256xf32>
    %5 = vector.broadcast %3 : vector<1x1x256xf32> to vector<8x8x256xf32>
    %6 = arith.mulf %4, %5 : vector<8x8x256xf32>
    %c0_6 = arith.constant 0 : index
    %c0_7 = arith.constant 0 : index
    %c0_8 = arith.constant 0 : index
    %7 = vector.load %arg3[%c0_6, %c0_7, %c0_8] : memref<1x1x256xf32, #tpu.memory_space<vmem>>, vector<1x1x256xf32>
    %8 = vector.broadcast %7 : vector<1x1x256xf32> to vector<8x8x256xf32>
    %9 = arith.addf %6, %8 : vector<8x8x256xf32>
    %c0_9 = arith.constant 0 : index
    %c0_10 = arith.constant 0 : index
    %c0_11 = arith.constant 0 : index
    %10 = vector.load %arg7[%c0_9, %c0_10, %c0_11] : memref<8x8x256xf32, #tpu.memory_space<vmem>>, vector<8x8x256xf32>
    tpu.vector_store %arg7[%c0_9, %c0_10, %c0_11], %9 {strides = array<i32>} : memref<8x8x256xf32, #tpu.memory_space<vmem>>, vector<8x8x256xf32>,
    %cst = arith.constant 0.000000e+00 : f32
    %11 = vector.broadcast %cst : f32 to vector<8x64xf32>
    %cst_12 = arith.constant 0.000000e+00 : f32
    %12 = vector.broadcast %cst_12 : f32 to vector<8x64xf32>
    %c0_i32 = arith.constant 0 : i32
    %13 = arith.index_cast %c0_i32 : i32 to index
    %c0_13 = arith.constant 0 : index
    %c0_14 = arith.constant 0 : index
    %14 = vector.load %arg7[%13, %c0_13, %c0_14] : memref<8x8x256xf32, #tpu.memory_space<vmem>>, vector<1x8x256xf32>
    %15 = vector.shape_cast %14 : vector<1x8x256xf32> to vector<8x256xf32>
    %16 = arith.truncf %11 : vector<8x64xf32> to vector<8x64xbf16>
    %cst_15 = arith.constant dense<0.000000e+00> : vector<8x256xf32>
    %17 = tpu.matmul %16, %0, %cst_15 {dimension_numbers = #tpu.dot_dimension_numbers<[1], [0], [0], [1], [0, 0, 1, 1], [], []>} : vector<8x64xbf16>, vector<64x256xbf16>, vector<8x256xf32> -> vector<8x256xf32>
    %18 = arith.addf %15, %17 : vector<8x256xf32>
    %19 = vector.extract_strided_slice %18 {offsets = [0, 0], sizes = [8, 128], strides = [1, 1]} : vector<8x256xf32> to vector<8x128xf32>
    %20 = arith.negf %19 : vector<8x128xf32>
    %21 = math.exp %20 : vector<8x128xf32>
    %cst_16 = arith.constant 1.000000e+00 : f32
    %22 = vector.broadcast %cst_16 : f32 to vector<8x128xf32>
    %23 = arith.addf %22, %21 : vector<8x128xf32>
    %24 = arith.divf %22, %23 : vector<8x128xf32>
    %25 = vector.extract_strided_slice %18 {offsets = [0, 128], sizes = [8, 64], strides = [1, 1]} : vector<8x256xf32> to vector<8x64xf32>
    %26 = math.tanh %25 : vector<8x64xf32>
    %27 = vector.extract_strided_slice %24 {offsets = [0, 0], sizes = [8, 64], strides = [1, 1]} : vector<8x128xf32> to vector<8x64xf32>
    %28 = vector.extract_strided_slice %24 {offsets = [0, 64], sizes = [8, 64], strides = [1, 1]} : vector<8x128xf32> to vector<8x64xf32>
    %29 = arith.mulf %28, %12 : vector<8x64xf32>
    %30 = arith.mulf %27, %26 : vector<8x64xf32>
    %31 = arith.addf %29, %30 : vector<8x64xf32>
    %32 = vector.extract_strided_slice %18 {offsets = [0, 192], sizes = [8, 64], strides = [1, 1]} : vector<8x256xf32> to vector<8x64xf32>
    %33 = arith.negf %32 : vector<8x64xf32>
    %34 = math.exp %33 : vector<8x64xf32>
    %cst_17 = arith.constant 1.000000e+00 : f32
    %35 = vector.broadcast %cst_17 : f32 to vector<8x64xf32>
    %36 = arith.addf %35, %34 : vector<8x64xf32>
    %37 = arith.divf %35, %36 : vector<8x64xf32>
    %38 = math.tanh %31 : vector<8x64xf32>
    %39 = arith.mulf %37, %38 : vector<8x64xf32>
    %40 = arith.index_cast %c0_i32 : i32 to index
    %c0_18 = arith.constant 0 : index
    %c0_19 = arith.constant 0 : index
    %41 = vector.load %arg8[%40, %c0_18, %c0_19] : memref<8x8x64xf32, #tpu.memory_space<vmem>>, vector<1x8x64xf32>
    %42 = vector.shape_cast %41 : vector<1x8x64xf32> to vector<8x64xf32>
    %43 = vector.shape_cast %39 : vector<8x64xf32> to vector<1x8x64xf32>
    tpu.vector_store %arg8[%40, %c0_18, %c0_19], %43 {strides = array<i32>} : memref<8x8x64xf32, #tpu.memory_space<vmem>>, vector<1x8x64xf32>,
    %c1_i32 = arith.constant 1 : i32
    %44 = arith.index_cast %c1_i32 : i32 to index
    %c0_20 = arith.constant 0 : index
    %c0_21 = arith.constant 0 : index
    %45 = vector.load %arg7[%44, %c0_20, %c0_21] : memref<8x8x256xf32, #tpu.memory_space<vmem>>, vector<1x8x256xf32>
    %46 = vector.shape_cast %45 : vector<1x8x256xf32> to vector<8x256xf32>
    %47 = arith.truncf %39 : vector<8x64xf32> to vector<8x64xbf16>
    %cst_22 = arith.constant dense<0.000000e+00> : vector<8x256xf32>
    %48 = tpu.matmul %47, %0, %cst_22 {dimension_numbers = #tpu.dot_dimension_numbers<[1], [0], [0], [1], [0, 0, 1, 1], [], []>} : vector<8x64xbf16>, vector<64x256xbf16>, vector<8x256xf32> -> vector<8x256xf32>
    %49 = arith.addf %46, %48 : vector<8x256xf32>
    %50 = vector.extract_strided_slice %49 {offsets = [0, 0], sizes = [8, 128], strides = [1, 1]} : vector<8x256xf32> to vector<8x128xf32>
    %51 = arith.negf %50 : vector<8x128xf32>
    %52 = math.exp %51 : vector<8x128xf32>
    %cst_23 = arith.constant 1.000000e+00 : f32
    %53 = vector.broadcast %cst_23 : f32 to vector<8x128xf32>
    %54 = arith.addf %53, %52 : vector<8x128xf32>
    %55 = arith.divf %53, %54 : vector<8x128xf32>
    %56 = vector.extract_strided_slice %49 {offsets = [0, 128], sizes = [8, 64], strides = [1, 1]} : vector<8x256xf32> to vector<8x64xf32>
    %57 = math.tanh %56 : vector<8x64xf32>
    %58 = vector.extract_strided_slice %55 {offsets = [0, 0], sizes = [8, 64], strides = [1, 1]} : vector<8x128xf32> to vector<8x64xf32>
    %59 = vector.extract_strided_slice %55 {offsets = [0, 64], sizes = [8, 64], strides = [1, 1]} : vector<8x128xf32> to vector<8x64xf32>
    %60 = arith.mulf %59, %31 : vector<8x64xf32>
    %61 = arith.mulf %58, %57 : vector<8x64xf32>
    %62 = arith.addf %60, %61 : vector<8x64xf32>
    %63 = vector.extract_strided_slice %49 {offsets = [0, 192], sizes = [8, 64], strides = [1, 1]} : vector<8x256xf32> to vector<8x64xf32>
    %64 = arith.negf %63 : vector<8x64xf32>
    %65 = math.exp %64 : vector<8x64xf32>
    %cst_24 = arith.constant 1.000000e+00 : f32
    %66 = vector.broadcast %cst_24 : f32 to vector<8x64xf32>
    %67 = arith.addf %66, %65 : vector<8x64xf32>
    %68 = arith.divf %66, %67 : vector<8x64xf32>
    %69 = math.tanh %62 : vector<8x64xf32>
    %70 = arith.mulf %68, %69 : vector<8x64xf32>
    %71 = arith.index_cast %c1_i32 : i32 to index
    %c0_25 = arith.constant 0 : index
    %c0_26 = arith.constant 0 : index
    %72 = vector.load %arg8[%71, %c0_25, %c0_26] : memref<8x8x64xf32, #tpu.memory_space<vmem>>, vector<1x8x64xf32>
    %73 = vector.shape_cast %72 : vector<1x8x64xf32> to vector<8x64xf32>
    %74 = vector.shape_cast %70 : vector<8x64xf32> to vector<1x8x64xf32>
    tpu.vector_store %arg8[%71, %c0_25, %c0_26], %74 {strides = array<i32>} : memref<8x8x64xf32, #tpu.memory_space<vmem>>, vector<1x8x64xf32>,
    %c2_i32 = arith.constant 2 : i32
    %75 = arith.index_cast %c2_i32 : i32 to index
    %c0_27 = arith.constant 0 : index
    %c0_28 = arith.constant 0 : index
    %76 = vector.load %arg7[%75, %c0_27, %c0_28] : memref<8x8x256xf32, #tpu.memory_space<vmem>>, vector<1x8x256xf32>
    %77 = vector.shape_cast %76 : vector<1x8x256xf32> to vector<8x256xf32>
    %78 = arith.truncf %70 : vector<8x64xf32> to vector<8x64xbf16>
    %cst_29 = arith.constant dense<0.000000e+00> : vector<8x256xf32>
    %79 = tpu.matmul %78, %0, %cst_29 {dimension_numbers = #tpu.dot_dimension_numbers<[1], [0], [0], [1], [0, 0, 1, 1], [], []>} : vector<8x64xbf16>, vector<64x256xbf16>, vector<8x256xf32> -> vector<8x256xf32>
    %80 = arith.addf %77, %79 : vector<8x256xf32>
    %81 = vector.extract_strided_slice %80 {offsets = [0, 0], sizes = [8, 128], strides = [1, 1]} : vector<8x256xf32> to vector<8x128xf32>
    %82 = arith.negf %81 : vector<8x128xf32>
    %83 = math.exp %82 : vector<8x128xf32>
    %cst_30 = arith.constant 1.000000e+00 : f32
    %84 = vector.broadcast %cst_30 : f32 to vector<8x128xf32>
    %85 = arith.addf %84, %83 : vector<8x128xf32>
    %86 = arith.divf %84, %85 : vector<8x128xf32>
    %87 = vector.extract_strided_slice %80 {offsets = [0, 128], sizes = [8, 64], strides = [1, 1]} : vector<8x256xf32> to vector<8x64xf32>
    %88 = math.tanh %87 : vector<8x64xf32>
    %89 = vector.extract_strided_slice %86 {offsets = [0, 0], sizes = [8, 64], strides = [1, 1]} : vector<8x128xf32> to vector<8x64xf32>
    %90 = vector.extract_strided_slice %86 {offsets = [0, 64], sizes = [8, 64], strides = [1, 1]} : vector<8x128xf32> to vector<8x64xf32>
    %91 = arith.mulf %90, %62 : vector<8x64xf32>
    %92 = arith.mulf %89, %88 : vector<8x64xf32>
    %93 = arith.addf %91, %92 : vector<8x64xf32>
    %94 = vector.extract_strided_slice %80 {offsets = [0, 192], sizes = [8, 64], strides = [1, 1]} : vector<8x256xf32> to vector<8x64xf32>
    %95 = arith.negf %94 : vector<8x64xf32>
    %96 = math.exp %95 : vector<8x64xf32>
    %cst_31 = arith.constant 1.000000e+00 : f32
    %97 = vector.broadcast %cst_31 : f32 to vector<8x64xf32>
    %98 = arith.addf %97, %96 : vector<8x64xf32>
    %99 = arith.divf %97, %98 : vector<8x64xf32>
    %100 = math.tanh %93 : vector<8x64xf32>
    %101 = arith.mulf %99, %100 : vector<8x64xf32>
    %102 = arith.index_cast %c2_i32 : i32 to index
    %c0_32 = arith.constant 0 : index
    %c0_33 = arith.constant 0 : index
    %103 = vector.load %arg8[%102, %c0_32, %c0_33] : memref<8x8x64xf32, #tpu.memory_space<vmem>>, vector<1x8x64xf32>
    %104 = vector.shape_cast %103 : vector<1x8x64xf32> to vector<8x64xf32>
    %105 = vector.shape_cast %101 : vector<8x64xf32> to vector<1x8x64xf32>
    tpu.vector_store %arg8[%102, %c0_32, %c0_33], %105 {strides = array<i32>} : memref<8x8x64xf32, #tpu.memory_space<vmem>>, vector<1x8x64xf32>,
    %c3_i32 = arith.constant 3 : i32
    %106 = arith.index_cast %c3_i32 : i32 to index
    %c0_34 = arith.constant 0 : index
    %c0_35 = arith.constant 0 : index
    %107 = vector.load %arg7[%106, %c0_34, %c0_35] : memref<8x8x256xf32, #tpu.memory_space<vmem>>, vector<1x8x256xf32>
    %108 = vector.shape_cast %107 : vector<1x8x256xf32> to vector<8x256xf32>
    %109 = arith.truncf %101 : vector<8x64xf32> to vector<8x64xbf16>
    %cst_36 = arith.constant dense<0.000000e+00> : vector<8x256xf32>
    %110 = tpu.matmul %109, %0, %cst_36 {dimension_numbers = #tpu.dot_dimension_numbers<[1], [0], [0], [1], [0, 0, 1, 1], [], []>} : vector<8x64xbf16>, vector<64x256xbf16>, vector<8x256xf32> -> vector<8x256xf32>
    %111 = arith.addf %108, %110 : vector<8x256xf32>
    %112 = vector.extract_strided_slice %111 {offsets = [0, 0], sizes = [8, 128], strides = [1, 1]} : vector<8x256xf32> to vector<8x128xf32>
    %113 = arith.negf %112 : vector<8x128xf32>
    %114 = math.exp %113 : vector<8x128xf32>
    %cst_37 = arith.constant 1.000000e+00 : f32
    %115 = vector.broadcast %cst_37 : f32 to vector<8x128xf32>
    %116 = arith.addf %115, %114 : vector<8x128xf32>
    %117 = arith.divf %115, %116 : vector<8x128xf32>
    %118 = vector.extract_strided_slice %111 {offsets = [0, 128], sizes = [8, 64], strides = [1, 1]} : vector<8x256xf32> to vector<8x64xf32>
    %119 = math.tanh %118 : vector<8x64xf32>
    %120 = vector.extract_strided_slice %117 {offsets = [0, 0], sizes = [8, 64], strides = [1, 1]} : vector<8x128xf32> to vector<8x64xf32>
    %121 = vector.extract_strided_slice %117 {offsets = [0, 64], sizes = [8, 64], strides = [1, 1]} : vector<8x128xf32> to vector<8x64xf32>
    %122 = arith.mulf %121, %93 : vector<8x64xf32>
    %123 = arith.mulf %120, %119 : vector<8x64xf32>
    %124 = arith.addf %122, %123 : vector<8x64xf32>
    %125 = vector.extract_strided_slice %111 {offsets = [0, 192], sizes = [8, 64], strides = [1, 1]} : vector<8x256xf32> to vector<8x64xf32>
    %126 = arith.negf %125 : vector<8x64xf32>
    %127 = math.exp %126 : vector<8x64xf32>
    %cst_38 = arith.constant 1.000000e+00 : f32
    %128 = vector.broadcast %cst_38 : f32 to vector<8x64xf32>
    %129 = arith.addf %128, %127 : vector<8x64xf32>
    %130 = arith.divf %128, %129 : vector<8x64xf32>
    %131 = math.tanh %124 : vector<8x64xf32>
    %132 = arith.mulf %130, %131 : vector<8x64xf32>
    %133 = arith.index_cast %c3_i32 : i32 to index
    %c0_39 = arith.constant 0 : index
    %c0_40 = arith.constant 0 : index
    %134 = vector.load %arg8[%133, %c0_39, %c0_40] : memref<8x8x64xf32, #tpu.memory_space<vmem>>, vector<1x8x64xf32>
    %135 = vector.shape_cast %134 : vector<1x8x64xf32> to vector<8x64xf32>
    %136 = vector.shape_cast %132 : vector<8x64xf32> to vector<1x8x64xf32>
    tpu.vector_store %arg8[%133, %c0_39, %c0_40], %136 {strides = array<i32>} : memref<8x8x64xf32, #tpu.memory_space<vmem>>, vector<1x8x64xf32>,
    %c4_i32 = arith.constant 4 : i32
    %137 = arith.index_cast %c4_i32 : i32 to index
    %c0_41 = arith.constant 0 : index
    %c0_42 = arith.constant 0 : index
    %138 = vector.load %arg7[%137, %c0_41, %c0_42] : memref<8x8x256xf32, #tpu.memory_space<vmem>>, vector<1x8x256xf32>
    %139 = vector.shape_cast %138 : vector<1x8x256xf32> to vector<8x256xf32>
    %140 = arith.truncf %132 : vector<8x64xf32> to vector<8x64xbf16>
    %cst_43 = arith.constant dense<0.000000e+00> : vector<8x256xf32>
    %141 = tpu.matmul %140, %0, %cst_43 {dimension_numbers = #tpu.dot_dimension_numbers<[1], [0], [0], [1], [0, 0, 1, 1], [], []>} : vector<8x64xbf16>, vector<64x256xbf16>, vector<8x256xf32> -> vector<8x256xf32>
    %142 = arith.addf %139, %141 : vector<8x256xf32>
    %143 = vector.extract_strided_slice %142 {offsets = [0, 0], sizes = [8, 128], strides = [1, 1]} : vector<8x256xf32> to vector<8x128xf32>
    %144 = arith.negf %143 : vector<8x128xf32>
    %145 = math.exp %144 : vector<8x128xf32>
    %cst_44 = arith.constant 1.000000e+00 : f32
    %146 = vector.broadcast %cst_44 : f32 to vector<8x128xf32>
    %147 = arith.addf %146, %145 : vector<8x128xf32>
    %148 = arith.divf %146, %147 : vector<8x128xf32>
    %149 = vector.extract_strided_slice %142 {offsets = [0, 128], sizes = [8, 64], strides = [1, 1]} : vector<8x256xf32> to vector<8x64xf32>
    %150 = math.tanh %149 : vector<8x64xf32>
    %151 = vector.extract_strided_slice %148 {offsets = [0, 0], sizes = [8, 64], strides = [1, 1]} : vector<8x128xf32> to vector<8x64xf32>
    %152 = vector.extract_strided_slice %148 {offsets = [0, 64], sizes = [8, 64], strides = [1, 1]} : vector<8x128xf32> to vector<8x64xf32>
    %153 = arith.mulf %152, %124 : vector<8x64xf32>
    %154 = arith.mulf %151, %150 : vector<8x64xf32>
    %155 = arith.addf %153, %154 : vector<8x64xf32>
    %156 = vector.extract_strided_slice %142 {offsets = [0, 192], sizes = [8, 64], strides = [1, 1]} : vector<8x256xf32> to vector<8x64xf32>
    %157 = arith.negf %156 : vector<8x64xf32>
    %158 = math.exp %157 : vector<8x64xf32>
    %cst_45 = arith.constant 1.000000e+00 : f32
    %159 = vector.broadcast %cst_45 : f32 to vector<8x64xf32>
    %160 = arith.addf %159, %158 : vector<8x64xf32>
    %161 = arith.divf %159, %160 : vector<8x64xf32>
    %162 = math.tanh %155 : vector<8x64xf32>
    %163 = arith.mulf %161, %162 : vector<8x64xf32>
    %164 = arith.index_cast %c4_i32 : i32 to index
    %c0_46 = arith.constant 0 : index
    %c0_47 = arith.constant 0 : index
    %165 = vector.load %arg8[%164, %c0_46, %c0_47] : memref<8x8x64xf32, #tpu.memory_space<vmem>>, vector<1x8x64xf32>
    %166 = vector.shape_cast %165 : vector<1x8x64xf32> to vector<8x64xf32>
    %167 = vector.shape_cast %163 : vector<8x64xf32> to vector<1x8x64xf32>
    tpu.vector_store %arg8[%164, %c0_46, %c0_47], %167 {strides = array<i32>} : memref<8x8x64xf32, #tpu.memory_space<vmem>>, vector<1x8x64xf32>,
    %c5_i32 = arith.constant 5 : i32
    %168 = arith.index_cast %c5_i32 : i32 to index
    %c0_48 = arith.constant 0 : index
    %c0_49 = arith.constant 0 : index
    %169 = vector.load %arg7[%168, %c0_48, %c0_49] : memref<8x8x256xf32, #tpu.memory_space<vmem>>, vector<1x8x256xf32>
    %170 = vector.shape_cast %169 : vector<1x8x256xf32> to vector<8x256xf32>
    %171 = arith.truncf %163 : vector<8x64xf32> to vector<8x64xbf16>
    %cst_50 = arith.constant dense<0.000000e+00> : vector<8x256xf32>
    %172 = tpu.matmul %171, %0, %cst_50 {dimension_numbers = #tpu.dot_dimension_numbers<[1], [0], [0], [1], [0, 0, 1, 1], [], []>} : vector<8x64xbf16>, vector<64x256xbf16>, vector<8x256xf32> -> vector<8x256xf32>
    %173 = arith.addf %170, %172 : vector<8x256xf32>
    %174 = vector.extract_strided_slice %173 {offsets = [0, 0], sizes = [8, 128], strides = [1, 1]} : vector<8x256xf32> to vector<8x128xf32>
    %175 = arith.negf %174 : vector<8x128xf32>
    %176 = math.exp %175 : vector<8x128xf32>
    %cst_51 = arith.constant 1.000000e+00 : f32
    %177 = vector.broadcast %cst_51 : f32 to vector<8x128xf32>
    %178 = arith.addf %177, %176 : vector<8x128xf32>
    %179 = arith.divf %177, %178 : vector<8x128xf32>
    %180 = vector.extract_strided_slice %173 {offsets = [0, 128], sizes = [8, 64], strides = [1, 1]} : vector<8x256xf32> to vector<8x64xf32>
    %181 = math.tanh %180 : vector<8x64xf32>
    %182 = vector.extract_strided_slice %179 {offsets = [0, 0], sizes = [8, 64], strides = [1, 1]} : vector<8x128xf32> to vector<8x64xf32>
    %183 = vector.extract_strided_slice %179 {offsets = [0, 64], sizes = [8, 64], strides = [1, 1]} : vector<8x128xf32> to vector<8x64xf32>
    %184 = arith.mulf %183, %155 : vector<8x64xf32>
    %185 = arith.mulf %182, %181 : vector<8x64xf32>
    %186 = arith.addf %184, %185 : vector<8x64xf32>
    %187 = vector.extract_strided_slice %173 {offsets = [0, 192], sizes = [8, 64], strides = [1, 1]} : vector<8x256xf32> to vector<8x64xf32>
    %188 = arith.negf %187 : vector<8x64xf32>
    %189 = math.exp %188 : vector<8x64xf32>
    %cst_52 = arith.constant 1.000000e+00 : f32
    %190 = vector.broadcast %cst_52 : f32 to vector<8x64xf32>
    %191 = arith.addf %190, %189 : vector<8x64xf32>
    %192 = arith.divf %190, %191 : vector<8x64xf32>
    %193 = math.tanh %186 : vector<8x64xf32>
    %194 = arith.mulf %192, %193 : vector<8x64xf32>
    %195 = arith.index_cast %c5_i32 : i32 to index
    %c0_53 = arith.constant 0 : index
    %c0_54 = arith.constant 0 : index
    %196 = vector.load %arg8[%195, %c0_53, %c0_54] : memref<8x8x64xf32, #tpu.memory_space<vmem>>, vector<1x8x64xf32>
    %197 = vector.shape_cast %196 : vector<1x8x64xf32> to vector<8x64xf32>
    %198 = vector.shape_cast %194 : vector<8x64xf32> to vector<1x8x64xf32>
    tpu.vector_store %arg8[%195, %c0_53, %c0_54], %198 {strides = array<i32>} : memref<8x8x64xf32, #tpu.memory_space<vmem>>, vector<1x8x64xf32>,
    %c6_i32 = arith.constant 6 : i32
    %199 = arith.index_cast %c6_i32 : i32 to index
    %c0_55 = arith.constant 0 : index
    %c0_56 = arith.constant 0 : index
    %200 = vector.load %arg7[%199, %c0_55, %c0_56] : memref<8x8x256xf32, #tpu.memory_space<vmem>>, vector<1x8x256xf32>
    %201 = vector.shape_cast %200 : vector<1x8x256xf32> to vector<8x256xf32>
    %202 = arith.truncf %194 : vector<8x64xf32> to vector<8x64xbf16>
    %cst_57 = arith.constant dense<0.000000e+00> : vector<8x256xf32>
    %203 = tpu.matmul %202, %0, %cst_57 {dimension_numbers = #tpu.dot_dimension_numbers<[1], [0], [0], [1], [0, 0, 1, 1], [], []>} : vector<8x64xbf16>, vector<64x256xbf16>, vector<8x256xf32> -> vector<8x256xf32>
    %204 = arith.addf %201, %203 : vector<8x256xf32>
    %205 = vector.extract_strided_slice %204 {offsets = [0, 0], sizes = [8, 128], strides = [1, 1]} : vector<8x256xf32> to vector<8x128xf32>
    %206 = arith.negf %205 : vector<8x128xf32>
    %207 = math.exp %206 : vector<8x128xf32>
    %cst_58 = arith.constant 1.000000e+00 : f32
    %208 = vector.broadcast %cst_58 : f32 to vector<8x128xf32>
    %209 = arith.addf %208, %207 : vector<8x128xf32>
    %210 = arith.divf %208, %209 : vector<8x128xf32>
    %211 = vector.extract_strided_slice %204 {offsets = [0, 128], sizes = [8, 64], strides = [1, 1]} : vector<8x256xf32> to vector<8x64xf32>
    %212 = math.tanh %211 : vector<8x64xf32>
    %213 = vector.extract_strided_slice %210 {offsets = [0, 0], sizes = [8, 64], strides = [1, 1]} : vector<8x128xf32> to vector<8x64xf32>
    %214 = vector.extract_strided_slice %210 {offsets = [0, 64], sizes = [8, 64], strides = [1, 1]} : vector<8x128xf32> to vector<8x64xf32>
    %215 = arith.mulf %214, %186 : vector<8x64xf32>
    %216 = arith.mulf %213, %212 : vector<8x64xf32>
    %217 = arith.addf %215, %216 : vector<8x64xf32>
    %218 = vector.extract_strided_slice %204 {offsets = [0, 192], sizes = [8, 64], strides = [1, 1]} : vector<8x256xf32> to vector<8x64xf32>
    %219 = arith.negf %218 : vector<8x64xf32>
    %220 = math.exp %219 : vector<8x64xf32>
    %cst_59 = arith.constant 1.000000e+00 : f32
    %221 = vector.broadcast %cst_59 : f32 to vector<8x64xf32>
    %222 = arith.addf %221, %220 : vector<8x64xf32>
    %223 = arith.divf %221, %222 : vector<8x64xf32>
    %224 = math.tanh %217 : vector<8x64xf32>
    %225 = arith.mulf %223, %224 : vector<8x64xf32>
    %226 = arith.index_cast %c6_i32 : i32 to index
    %c0_60 = arith.constant 0 : index
    %c0_61 = arith.constant 0 : index
    %227 = vector.load %arg8[%226, %c0_60, %c0_61] : memref<8x8x64xf32, #tpu.memory_space<vmem>>, vector<1x8x64xf32>
    %228 = vector.shape_cast %227 : vector<1x8x64xf32> to vector<8x64xf32>
    %229 = vector.shape_cast %225 : vector<8x64xf32> to vector<1x8x64xf32>
    tpu.vector_store %arg8[%226, %c0_60, %c0_61], %229 {strides = array<i32>} : memref<8x8x64xf32, #tpu.memory_space<vmem>>, vector<1x8x64xf32>,
    %c7_i32 = arith.constant 7 : i32
    %230 = arith.index_cast %c7_i32 : i32 to index
    %c0_62 = arith.constant 0 : index
    %c0_63 = arith.constant 0 : index
    %231 = vector.load %arg7[%230, %c0_62, %c0_63] : memref<8x8x256xf32, #tpu.memory_space<vmem>>, vector<1x8x256xf32>
    %232 = vector.shape_cast %231 : vector<1x8x256xf32> to vector<8x256xf32>
    %233 = arith.truncf %225 : vector<8x64xf32> to vector<8x64xbf16>
    %cst_64 = arith.constant dense<0.000000e+00> : vector<8x256xf32>
    %234 = tpu.matmul %233, %0, %cst_64 {dimension_numbers = #tpu.dot_dimension_numbers<[1], [0], [0], [1], [0, 0, 1, 1], [], []>} : vector<8x64xbf16>, vector<64x256xbf16>, vector<8x256xf32> -> vector<8x256xf32>
    %235 = arith.addf %232, %234 : vector<8x256xf32>
    %236 = vector.extract_strided_slice %235 {offsets = [0, 0], sizes = [8, 128], strides = [1, 1]} : vector<8x256xf32> to vector<8x128xf32>
    %237 = arith.negf %236 : vector<8x128xf32>
    %238 = math.exp %237 : vector<8x128xf32>
    %cst_65 = arith.constant 1.000000e+00 : f32
    %239 = vector.broadcast %cst_65 : f32 to vector<8x128xf32>
    %240 = arith.addf %239, %238 : vector<8x128xf32>
    %241 = arith.divf %239, %240 : vector<8x128xf32>
    %242 = vector.extract_strided_slice %235 {offsets = [0, 128], sizes = [8, 64], strides = [1, 1]} : vector<8x256xf32> to vector<8x64xf32>
    %243 = math.tanh %242 : vector<8x64xf32>
    %244 = vector.extract_strided_slice %241 {offsets = [0, 0], sizes = [8, 64], strides = [1, 1]} : vector<8x128xf32> to vector<8x64xf32>
    %245 = vector.extract_strided_slice %241 {offsets = [0, 64], sizes = [8, 64], strides = [1, 1]} : vector<8x128xf32> to vector<8x64xf32>
    %246 = arith.mulf %245, %217 : vector<8x64xf32>
    %247 = arith.mulf %244, %243 : vector<8x64xf32>
    %248 = arith.addf %246, %247 : vector<8x64xf32>
    %249 = vector.extract_strided_slice %235 {offsets = [0, 192], sizes = [8, 64], strides = [1, 1]} : vector<8x256xf32> to vector<8x64xf32>
    %250 = arith.negf %249 : vector<8x64xf32>
    %251 = math.exp %250 : vector<8x64xf32>
    %cst_66 = arith.constant 1.000000e+00 : f32
    %252 = vector.broadcast %cst_66 : f32 to vector<8x64xf32>
    %253 = arith.addf %252, %251 : vector<8x64xf32>
    %254 = arith.divf %252, %253 : vector<8x64xf32>
    %255 = math.tanh %248 : vector<8x64xf32>
    %256 = arith.mulf %254, %255 : vector<8x64xf32>
    %257 = arith.index_cast %c7_i32 : i32 to index
    %c0_67 = arith.constant 0 : index
    %c0_68 = arith.constant 0 : index
    %258 = vector.load %arg8[%257, %c0_67, %c0_68] : memref<8x8x64xf32, #tpu.memory_space<vmem>>, vector<1x8x64xf32>
    %259 = vector.shape_cast %258 : vector<1x8x64xf32> to vector<8x64xf32>
    %260 = vector.shape_cast %256 : vector<8x64xf32> to vector<1x8x64xf32>
    tpu.vector_store %arg8[%257, %c0_67, %c0_68], %260 {strides = array<i32>} : memref<8x8x64xf32, #tpu.memory_space<vmem>>, vector<1x8x64xf32>,
    %c8_i32 = arith.constant 8 : i32
    %c0_69 = arith.constant 0 : index
    %c0_70 = arith.constant 0 : index
    %c0_71 = arith.constant 0 : index
    %261 = vector.load %arg8[%c0_69, %c0_70, %c0_71] : memref<8x8x64xf32, #tpu.memory_space<vmem>>, vector<8x8x64xf32>
    %c0_72 = arith.constant 0 : index
    %c0_73 = arith.constant 0 : index
    %c0_74 = arith.constant 0 : index
    %262 = vector.load %arg4[%c0_72, %c0_73, %c0_74] : memref<1x1x64xf32, #tpu.memory_space<vmem>>, vector<1x1x64xf32>
    %263 = vector.broadcast %262 : vector<1x1x64xf32> to vector<8x8x64xf32>
    %264 = arith.mulf %261, %263 : vector<8x8x64xf32>
    %cst_75 = arith.constant dense<0.000000e+00> : vector<8x8xf32>
    %265 = vector.multi_reduction <add>, %264, %cst_75 [2] : vector<8x8x64xf32> to vector<8x8xf32>
    %c0_76 = arith.constant 0 : index
    %c0_77 = arith.constant 0 : index
    %266 = vector.load %arg5[%c0_76, %c0_77] : memref<1x1xf32, #tpu.memory_space<vmem>>, vector<1x1xf32>
    %267 = vector.broadcast %266 : vector<1x1xf32> to vector<8x8xf32>
    %268 = arith.addf %265, %267 : vector<8x8xf32>
    %c0_78 = arith.constant 0 : index
    %c0_79 = arith.constant 0 : index
    %269 = vector.load %arg6[%c0_78, %c0_79] : memref<8x8xf32, #tpu.memory_space<vmem>>, vector<8x8xf32>
    tpu.vector_store %arg6[%c0_78, %c0_79], %268 {strides = array<i32>} : memref<8x8xf32, #tpu.memory_space<vmem>>, vector<8x8xf32>,
    return
  }
}

</mosaic_0001>

<llo_original>
// kernel: tpu_custom_call.1
$region0: #{tpu_custom_call.1}
  #allocation0 [shape = 'u32[]', space=smem, size = 0x4, offset = 0x4, fixed_abs, tag = 'smem constant byte address 0x4 - core index']
  #allocation1 [shape = 'u32[144,128]{1,0:T(1,128)}', space=vmem, size = 0x12000, scoped, tag = 'internal scratch']
  #allocation2 [shape = 'f32[8,8,256]{2,1,0:T(8,128)}', space=vmem, size = 0x10000, scoped, tag = 'scratch operand']
  #allocation3 [shape = 'f32[8,8,64]{2,1,0:T(8,128)}', space=vmem, size = 0x8000, scoped, tag = 'scratch operand']
  #allocation4 [shape = 'f32[1,1]{1,0:T(1,128)S(1)}', space=vmem, size = 0x200, scoped, tag = 'scoped memory for tpu_custom_call.1']
  %s0 = inlined_call_operand.hbm [shape: f32[8,8], index: 0, kind: input, shape index: {}]
  %s1 = inlined_call_operand.vmem [shape: f32[1,1,256], index: 1, kind: input, shape index: {}]
  %s2 = inlined_call_operand.hbm [shape: bf16[64,256], index: 2, kind: input, shape index: {}]
  %s3 = inlined_call_operand.vmem [shape: f32[1,1,256], index: 3, kind: input, shape index: {}]
  %s4 = inlined_call_operand.vmem [shape: f32[1,1,64], index: 4, kind: input, shape index: {}]
  %s5 = inlined_call_operand.<no memory space> [shape: f32[1,1], index: 5, kind: input, shape index: {}]
  %s6 = inlined_call_operand.hbm [shape: f32[8,8], index: 6, kind: output, shape index: {}]
  %s7 = sld [smem:[#allocation0]]
  $region42: #{tpu_custom_call.1} parent=0
    _
  %s9 = ssub.s32 1, %s7
  %s10 = scalar_select 0, %s9, %s7
  %v11 = vstv %s5
  %12 = vst [vmem:[#allocation4] sm:$0x1] %v11
  $region1: #{tpu_custom_call.1} parent=0
    #allocation5 [shape = 'u8[4096]{0}', space=vmem, size = 0x1000, scoped, tag = 'input window, operand 0, single buffered']
    #allocation6 [shape = 's32[1]{0}', space=sflag, size = 0x4, scoped, tag = 'scoped memory for tpu_custom_call.1']
    #allocation7 [shape = 's32[1]{0}', space=sflag, size = 0x4, scoped, tag = 'scoped memory for tpu_custom_call.1']
    #allocation8 [shape = 'u8[32768]{0}', space=vmem, size = 0x8000, scoped, tag = 'input window, operand 2, single buffered']
    #allocation9 [shape = 's32[1]{0}', space=sflag, size = 0x4, scoped, tag = 'scoped memory for tpu_custom_call.1']
    #allocation10 [shape = 'u8[4096]{0}', space=vmem, size = 0x1000, scoped, tag = 'output window, operand 0, single buffered']
    %13 = vsyncpa [#allocation6], 0
    %14 = vsyncpa [#allocation9], 0
    %15 = vsyncpa [#allocation7], 0
    // Predicated region
    $region2: #{tpu_custom_call.1} parent=1 // pred_check
      _
    $region3: #{tpu_custom_call.1} parent=1 // pred_check_branch
      %17 = sbr.rel (0) target = $region5
    $region4: #{tpu_custom_call.1} parent=1 // pred_region
      %s19 = ssub.s32 128, 128
      %20 = vsyncadd [#allocation6], %s19
      %s22 = sshll.u32 [#allocation5], 4
      %s23 = int_to_ptr.vmem [resolvable:$true] %s22
      %25 = dma.hbm_to_vmem [thread:$0]  %s0, 128, %s23, [#allocation6]
    $region5: #{tpu_custom_call.1} parent=1 // pred_fallthru
      _
    // Predicated region
    $region6: #{tpu_custom_call.1} parent=1 // pred_check
      _
    $region7: #{tpu_custom_call.1} parent=1 // pred_check_branch
      %27 = sbr.rel (0) target = $region9
    $region8: #{tpu_custom_call.1} parent=1 // pred_region
      _
    $region9: #{tpu_custom_call.1} parent=1 // pred_fallthru
      _
    // Predicated region
    $region10: #{tpu_custom_call.1} parent=1 // pred_check
      _
    $region11: #{tpu_custom_call.1} parent=1 // pred_check_branch
      %29 = sbr.rel (0) target = $region13
    $region12: #{tpu_custom_call.1} parent=1 // pred_region
      %s31 = ssub.s32 1024, 1024
      %32 = vsyncadd [#allocation9], %s31
      %s33 = sshll.u32 [#allocation8], 4
      %s34 = int_to_ptr.vmem [resolvable:$true] %s33
      %39 = dma.hbm_to_vmem [thread:$0]  %s2, 1024, %s34, [#allocation9], 128, 128, 8
    $region13: #{tpu_custom_call.1} parent=1 // pred_fallthru
      _
    // Predicated region
    $region14: #{tpu_custom_call.1} parent=1 // pred_check
      _
    $region15: #{tpu_custom_call.1} parent=1 // pred_check_branch
      %41 = sbr.rel (0) target = $region17
    $region16: #{tpu_custom_call.1} parent=1 // pred_region
      _
    $region17: #{tpu_custom_call.1} parent=1 // pred_fallthru
      _
    // Predicated region
    $region18: #{tpu_custom_call.1} parent=1 // pred_check
      _
    $region19: #{tpu_custom_call.1} parent=1 // pred_check_branch
      %43 = sbr.rel (0) target = $region21
    $region20: #{tpu_custom_call.1} parent=1 // pred_region
      _
    $region21: #{tpu_custom_call.1} parent=1 // pred_fallthru
      _
    // Predicated region
    $region22: #{tpu_custom_call.1} parent=1 // pred_check
      _
    $region23: #{tpu_custom_call.1} parent=1 // pred_check_branch
      %45 = sbr.rel (0) target = $region25
    $region24: #{tpu_custom_call.1} parent=1 // pred_region
      _
    $region25: #{tpu_custom_call.1} parent=1 // pred_fallthru
      _
    // Predicated region
    $region26: #{tpu_custom_call.1} parent=1 // pred_check
      _
    $region27: #{tpu_custom_call.1} parent=1 // pred_check_branch
      %47 = sbr.rel (0) target = $region29
    $region28: #{tpu_custom_call.1} parent=1 // pred_region
      %48 = dma.done [#allocation6], 128
    $region29: #{tpu_custom_call.1} parent=1 // pred_fallthru
      _
    // Predicated region
    $region30: #{tpu_custom_call.1} parent=1 // pred_check
      _
    $region31: #{tpu_custom_call.1} parent=1 // pred_check_branch
      %50 = sbr.rel (0) target = $region33
    $region32: #{tpu_custom_call.1} parent=1 // pred_region
      %51 = dma.done [#allocation9], 1024
    $region33: #{tpu_custom_call.1} parent=1 // pred_fallthru
      _
    %v53 = vld [vmem:[#allocation8] sm:$0xff]
    %v54 = vld [vmem:[#allocation8 + $0x8] sm:$0xff]
    %v55 = vld [vmem:[#allocation8 + $0x10] sm:$0xff]
    %v56 = vld [vmem:[#allocation8 + $0x18] sm:$0xff]
    %v57 = vld [vmem:[#allocation8 + $0x20] sm:$0xff]
    %v58 = vld [vmem:[#allocation8 + $0x28] sm:$0xff]
    %v59 = vld [vmem:[#allocation8 + $0x30] sm:$0xff]
    %v60 = vld [vmem:[#allocation8 + $0x38] sm:$0xff]
    %v61 = vld [vmem:[#allocation5] sm:$0xff]
    %v62 = vlaneseq
    %v63 = vshrl.u32 %v62, 7
    %v64 = vsub.s32 0, %v63
    %v65 = vrot.slane %v61, %v64
    %67 = vbcast.lane.b32.xlu0 %v65, 256
    %v68 = vpop.permute.xlu0 %67
    %v69 = vlaneseq
    %v70 = vshrl.u32 %v69, 7
    %v71 = vsub.s32 1, %v70
    %v72 = vrot.slane %v61, %v71
    %74 = vbcast.lane.b32.xlu0 %v72, 256
    %v75 = vpop.permute.xlu0 %74
    %v76 = vlaneseq
    %v77 = vshrl.u32 %v76, 7
    %v78 = vsub.s32 2, %v77
    %v79 = vrot.slane %v61, %v78
    %81 = vbcast.lane.b32.xlu0 %v79, 256
    %v82 = vpop.permute.xlu0 %81
    %v83 = vlaneseq
    %v84 = vshrl.u32 %v83, 7
    %v85 = vsub.s32 3, %v84
    %v86 = vrot.slane %v61, %v85
    %88 = vbcast.lane.b32.xlu0 %v86, 256
    %v89 = vpop.permute.xlu0 %88
    %v90 = vlaneseq
    %v91 = vshrl.u32 %v90, 7
    %v92 = vsub.s32 4, %v91
    %v93 = vrot.slane %v61, %v92
    %95 = vbcast.lane.b32.xlu0 %v93, 256
    %v96 = vpop.permute.xlu0 %95
    %v97 = vlaneseq
    %v98 = vshrl.u32 %v97, 7
    %v99 = vsub.s32 5, %v98
    %v100 = vrot.slane %v61, %v99
    %102 = vbcast.lane.b32.xlu0 %v100, 256
    %v103 = vpop.permute.xlu0 %102
    %v104 = vlaneseq
    %v105 = vshrl.u32 %v104, 7
    %v106 = vsub.s32 6, %v105
    %v107 = vrot.slane %v61, %v106
    %109 = vbcast.lane.b32.xlu0 %v107, 256
    %v110 = vpop.permute.xlu0 %109
    %v111 = vlaneseq
    %v112 = vshrl.u32 %v111, 7
    %v113 = vsub.s32 7, %v112
    %v114 = vrot.slane %v61, %v113
    %116 = vbcast.lane.b32.xlu0 %v114, 256
    %v117 = vpop.permute.xlu0 %116
    %v118 = vld [vmem:[%s1] sm:$0x3]
    %v120 = vlaneseq
    %v121 = vshrl.u32 %v120, 7
    %v122 = vsub.s32 0, %v121
    %v123 = vrot.slane %v118, %v122
    %v124 = vlaneseq
    %v125 = vshrl.u32 %v124, 7
    %v126 = vsub.s32 1, %v125
    %v127 = vrot.slane %v118, %v126
    %v130 = vmul.f32 %v68, %v123
    %v131 = vmul.f32 %v68, %v127
    %v132 = vmul.f32 %v75, %v123
    %v133 = vmul.f32 %v75, %v127
    %v134 = vmul.f32 %v82, %v123
    %v135 = vmul.f32 %v82, %v127
    %v136 = vmul.f32 %v89, %v123
    %v137 = vmul.f32 %v89, %v127
    %v138 = vmul.f32 %v96, %v123
    %v139 = vmul.f32 %v96, %v127
    %v140 = vmul.f32 %v103, %v123
    %v141 = vmul.f32 %v103, %v127
    %v142 = vmul.f32 %v110, %v123
    %v143 = vmul.f32 %v110, %v127
    %v144 = vmul.f32 %v117, %v123
    %v145 = vmul.f32 %v117, %v127
    %v146 = vld [vmem:[%s3] sm:$0x3]
    %v148 = vlaneseq
    %v149 = vshrl.u32 %v148, 7
    %v150 = vsub.s32 0, %v149
    %v151 = vrot.slane %v146, %v150
    %v152 = vlaneseq
    %v153 = vshrl.u32 %v152, 7
    %v154 = vsub.s32 1, %v153
    %v155 = vrot.slane %v146, %v154
    %v158 = vadd.f32 %v130, %v151
    %v159 = vadd.f32 %v131, %v155
    %v160 = vadd.f32 %v132, %v151
    %v161 = vadd.f32 %v133, %v155
    %v162 = vadd.f32 %v134, %v151
    %v163 = vadd.f32 %v135, %v155
    %v164 = vadd.f32 %v136, %v151
    %v165 = vadd.f32 %v137, %v155
    %v166 = vadd.f32 %v138, %v151
    %v167 = vadd.f32 %v139, %v155
    %v168 = vadd.f32 %v140, %v151
    %v169 = vadd.f32 %v141, %v155
    %v170 = vadd.f32 %v142, %v151
    %v171 = vadd.f32 %v143, %v155
    %v172 = vadd.f32 %v144, %v151
    %v173 = vadd.f32 %v145, %v155
    %174 = vst [vmem:[#allocation2] sm:$0xff] %v158
    %175 = vst [vmem:[#allocation2 + $0x8] sm:$0xff] %v159
    %176 = vst [vmem:[#allocation2 + $0x10] sm:$0xff] %v160
    %177 = vst [vmem:[#allocation2 + $0x18] sm:$0xff] %v161
    %178 = vst [vmem:[#allocation2 + $0x20] sm:$0xff] %v162
    %179 = vst [vmem:[#allocation2 + $0x28] sm:$0xff] %v163
    %180 = vst [vmem:[#allocation2 + $0x30] sm:$0xff] %v164
    %181 = vst [vmem:[#allocation2 + $0x38] sm:$0xff] %v165
    %182 = vst [vmem:[#allocation2 + $0x40] sm:$0xff] %v166
    %183 = vst [vmem:[#allocation2 + $0x48] sm:$0xff] %v167
    %184 = vst [vmem:[#allocation2 + $0x50] sm:$0xff] %v168
    %185 = vst [vmem:[#allocation2 + $0x58] sm:$0xff] %v169
    %186 = vst [vmem:[#allocation2 + $0x60] sm:$0xff] %v170
    %187 = vst [vmem:[#allocation2 + $0x68] sm:$0xff] %v171
    %188 = vst [vmem:[#allocation2 + $0x70] sm:$0xff] %v172
    %189 = vst [vmem:[#allocation2 + $0x78] sm:$0xff] %v173
    %v190 = vld [vmem:[#allocation2] sm:$0xff]
    %v191 = vld [vmem:[#allocation2 + $0x8] sm:$0xff]
    %v200 = vunpack.c.l.b16 %v53
    %v201 = vunpack.c.h.b16 %v53
    %v202 = vunpack.c.l.b16 %v54
    %v203 = vunpack.c.h.b16 %v54
    %v204 = vunpack.c.l.b16 %v55
    %v205 = vunpack.c.h.b16 %v55
    %v206 = vunpack.c.l.b16 %v56
    %v207 = vunpack.c.h.b16 %v56
    %v208 = vunpack.c.l.b16 %v57
    %v209 = vunpack.c.h.b16 %v57
    %v210 = vunpack.c.l.b16 %v58
    %v211 = vunpack.c.h.b16 %v58
    %v212 = vunpack.c.l.b16 %v59
    %v213 = vunpack.c.h.b16 %v59
    %v214 = vunpack.c.l.b16 %v60
    %v215 = vunpack.c.h.b16 %v60
    %v216 = vpack.c.b16 %v202, %v200
    %v217 = vpack.c.b16 %v203, %v201
    %v218 = vpack.c.b16 %v206, %v204
    %v219 = vpack.c.b16 %v207, %v205
    %v220 = vpack.c.b16 %v210, %v208
    %v221 = vpack.c.b16 %v211, %v209
    %v222 = vpack.c.b16 %v214, %v212
    %v223 = vpack.c.b16 %v215, %v213
    %vm232 = vcmask 523264
    %v234 = vsel %vm232, 0, 0
    %236 = vmatprep.subr.bf16.mxu0 0
    %237 = vmatpush1.bf16.msra.mxu0 0
    %238 = vmatprep.subr.bf16.mxu0 0
    %239 = vmatpush1.bf16.msra.mxu0 0
    %240 = vmatprep.subr.bf16.mxu0 0
    %241 = vmatpush1.bf16.msra.mxu0 0
    %242 = vmatprep.subr.bf16.mxu0 0
    %243 = vmatpush1.bf16.msra.mxu0 0
    %244 = vmatprep.subr.bf16.mxu0 %v223
    %245 = vmatpush1.bf16.msra.mxu0 %v222
    %246 = vmatprep.subr.bf16.mxu0 %v221
    %247 = vmatpush1.bf16.msra.mxu0 %v220
    %248 = vmatprep.subr.bf16.mxu0 %v219
    %249 = vmatpush1.bf16.msra.mxu0 %v218
    %250 = vmatprep.subr.bf16.mxu0 %v217
    %251 = vmatpush1.bf16.msra.mxu0 %v216
    %252 = vmatprep.subr.bf16.mxu0 0
    %253 = vmatpush2.bf16.msra.mxu0 0
    %254 = vmatprep.subr.bf16.mxu0 0
    %255 = vmatpush2.bf16.msra.mxu0 0
    %256 = vmatprep.subr.bf16.mxu0 0
    %257 = vmatpush2.bf16.msra.mxu0 0
    %258 = vmatprep.subr.bf16.mxu0 0
    %259 = vmatpush2.bf16.msra.mxu0 0
    %260 = vmatprep.subr.bf16.mxu0 0
    %261 = vmatpush2.bf16.msra.mxu0 0
    %262 = vmatprep.subr.bf16.mxu0 0
    %263 = vmatpush2.bf16.msra.mxu0 0
    %264 = vmatprep.subr.bf16.mxu0 0
    %265 = vmatpush2.bf16.msra.mxu0 0
    %266 = vmatprep.subr.bf16.mxu0 0
    %267 = vmatpush2.bf16.msra.mxu0 0
    %268 = vmatprep.mubr.bf16.mxu0 0
    %269 = vmatmul.mubr.bf16.gmra.mxu0 %v234
    %v270 = vpop.f32.mrf.mxu0
    %v271 = vadd.f32 0.0, %v270
    %v272 = vpop.f32.mrf.mxu0
    %v273 = vadd.f32 0.0, %v272
    %v274 = vpop.f32.mrf.mxu0
    %v275 = vpop.f32.mrf.mxu0
    %276 = vdwg.mxu0
    %v277 = vadd.f32 %v190, %v271
    %v278 = vadd.f32 %v191, %v273
    %v279 = vxor.u32 %v277, 2147483648
    %v280 = vmul.f32 %v279, 1.442695
    %v281 = vpow.pop %v280
    %v282 = vadd.f32 %v281, 1.0
    %v283 = vrcp.pop %v282
    %v284 = vmul.f32 1.0, %v283
    %v285 = vtanh.pop %v278
    %v286 = vmul.f32 %v284, 0.0
    %v287 = vmul.f32 %v284, %v285
    %289 = vrot.lane.b32.xlu0 %v287, 64
    %v290 = vpop.permute.xlu0 %289
    %v292 = vadd.f32 %v286, %v290
    %v293 = vxor.u32 %v278, 2147483648
    %v294 = vmul.f32 %v293, 1.442695
    %v295 = vpow.pop %v294
    %v296 = vadd.f32 %v295, 1.0
    %v297 = vrcp.pop %v296
    %v298 = vmul.f32 1.0, %v297
    %v299 = vtanh.pop %v292
    %v300 = vmul.f32 %v298, %v299
    %302 = vrot.lane.b32.xlu0 %v300, 64
    %v303 = vpop.permute.xlu0 %302
    %305 = vst.msk [vmem:[#allocation3] sm:$0xff] %vm232, %v303
    %s306 = scalar_lea.vmem [#allocation2], 16
    %v307 = vld [vmem:[%s306] sm:$0xff]
    %v308 = vld [vmem:[%s306 + $0x8] sm:$0xff]
    %v309 = vpack.c.bf16 %v300, %v300
    %311 = vrot.lane.b32.xlu0 %v309, 64
    %v312 = vpop.permute.xlu0 %311
    %v314 = vsel %vm232, %v312, 0
    %316 = vmatprep.subr.bf16.mxu0 0
    %317 = vmatpush1.bf16.msra.mxu0 0
    %318 = vmatprep.subr.bf16.mxu0 0
    %319 = vmatpush1.bf16.msra.mxu0 0
    %320 = vmatprep.subr.bf16.mxu0 0
    %321 = vmatpush1.bf16.msra.mxu0 0
    %322 = vmatprep.subr.bf16.mxu0 0
    %323 = vmatpush1.bf16.msra.mxu0 0
    %324 = vmatprep.subr.bf16.mxu0 %v223
    %325 = vmatpush1.bf16.msra.mxu0 %v222
    %326 = vmatprep.subr.bf16.mxu0 %v221
    %327 = vmatpush1.bf16.msra.mxu0 %v220
    %328 = vmatprep.subr.bf16.mxu0 %v219
    %329 = vmatpush1.bf16.msra.mxu0 %v218
    %330 = vmatprep.subr.bf16.mxu0 %v217
    %331 = vmatpush1.bf16.msra.mxu0 %v216
    %332 = vmatprep.subr.bf16.mxu0 0
    %333 = vmatpush2.bf16.msra.mxu0 0
    %334 = vmatprep.subr.bf16.mxu0 0
    %335 = vmatpush2.bf16.msra.mxu0 0
    %336 = vmatprep.subr.bf16.mxu0 0
    %337 = vmatpush2.bf16.msra.mxu0 0
    %338 = vmatprep.subr.bf16.mxu0 0
    %339 = vmatpush2.bf16.msra.mxu0 0
    %340 = vmatprep.subr.bf16.mxu0 0
    %341 = vmatpush2.bf16.msra.mxu0 0
    %342 = vmatprep.subr.bf16.mxu0 0
    %343 = vmatpush2.bf16.msra.mxu0 0
    %344 = vmatprep.subr.bf16.mxu0 0
    %345 = vmatpush2.bf16.msra.mxu0 0
    %346 = vmatprep.subr.bf16.mxu0 0
    %347 = vmatpush2.bf16.msra.mxu0 0
    %348 = vmatprep.mubr.bf16.mxu0 0
    %349 = vmatmul.mubr.bf16.gmra.mxu0 %v314
    %v350 = vpop.f32.mrf.mxu0
    %v351 = vadd.f32 0.0, %v350
    %v352 = vpop.f32.mrf.mxu0
    %v353 = vadd.f32 0.0, %v352
    %v354 = vpop.f32.mrf.mxu0
    %v355 = vpop.f32.mrf.mxu0
    %356 = vdwg.mxu0
    %v357 = vadd.f32 %v307, %v351
    %v358 = vadd.f32 %v308, %v353
    %v359 = vxor.u32 %v357, 2147483648
    %v360 = vmul.f32 %v359, 1.442695
    %v361 = vpow.pop %v360
    %v362 = vadd.f32 %v361, 1.0
    %v363 = vrcp.pop %v362
    %v364 = vmul.f32 1.0, %v363
    %v365 = vtanh.pop %v358
    %v366 = vmul.f32 %v364, %v292
    %v367 = vmul.f32 %v364, %v365
    %369 = vrot.lane.b32.xlu0 %v367, 64
    %v370 = vpop.permute.xlu0 %369
    %v372 = vadd.f32 %v366, %v370
    %v373 = vxor.u32 %v358, 2147483648
    %v374 = vmul.f32 %v373, 1.442695
    %v375 = vpow.pop %v374
    %v376 = vadd.f32 %v375, 1.0
    %v377 = vrcp.pop %v376
    %v378 = vmul.f32 1.0, %v377
    %v379 = vtanh.pop %v372
    %v380 = vmul.f32 %v378, %v379
    %382 = vrot.lane.b32.xlu0 %v380, 64
    %v383 = vpop.permute.xlu0 %382
    %s385 = scalar_lea.vmem [#allocation3], 8
    %386 = vst.msk [vmem:[%s385] sm:$0xff] %vm232, %v383
    %s387 = scalar_lea.vmem [#allocation2], 32
    %v388 = vld [vmem:[%s387] sm:$0xff]
    %v389 = vld [vmem:[%s387 + $0x8] sm:$0xff]
    %v390 = vpack.c.bf16 %v380, %v380
    %392 = vrot.lane.b32.xlu0 %v390, 64
    %v393 = vpop.permute.xlu0 %392
    %v395 = vsel %vm232, %v393, 0
    %397 = vmatprep.subr.bf16.mxu0 0
    %398 = vmatpush1.bf16.msra.mxu0 0
    %399 = vmatprep.subr.bf16.mxu0 0
    %400 = vmatpush1.bf16.msra.mxu0 0
    %401 = vmatprep.subr.bf16.mxu0 0
    %402 = vmatpush1.bf16.msra.mxu0 0
    %403 = vmatprep.subr.bf16.mxu0 0
    %404 = vmatpush1.bf16.msra.mxu0 0
    %405 = vmatprep.subr.bf16.mxu0 %v223
    %406 = vmatpush1.bf16.msra.mxu0 %v222
    %407 = vmatprep.subr.bf16.mxu0 %v221
    %408 = vmatpush1.bf16.msra.mxu0 %v220
    %409 = vmatprep.subr.bf16.mxu0 %v219
    %410 = vmatpush1.bf16.msra.mxu0 %v218
    %411 = vmatprep.subr.bf16.mxu0 %v217
    %412 = vmatpush1.bf16.msra.mxu0 %v216
    %413 = vmatprep.subr.bf16.mxu0 0
    %414 = vmatpush2.bf16.msra.mxu0 0
    %415 = vmatprep.subr.bf16.mxu0 0
    %416 = vmatpush2.bf16.msra.mxu0 0
    %417 = vmatprep.subr.bf16.mxu0 0
    %418 = vmatpush2.bf16.msra.mxu0 0
    %419 = vmatprep.subr.bf16.mxu0 0
    %420 = vmatpush2.bf16.msra.mxu0 0
    %421 = vmatprep.subr.bf16.mxu0 0
    %422 = vmatpush2.bf16.msra.mxu0 0
    %423 = vmatprep.subr.bf16.mxu0 0
    %424 = vmatpush2.bf16.msra.mxu0 0
    %425 = vmatprep.subr.bf16.mxu0 0
    %426 = vmatpush2.bf16.msra.mxu0 0
    %427 = vmatprep.subr.bf16.mxu0 0
    %428 = vmatpush2.bf16.msra.mxu0 0
    %429 = vmatprep.mubr.bf16.mxu0 0
    %430 = vmatmul.mubr.bf16.gmra.mxu0 %v395
    %v431 = vpop.f32.mrf.mxu0
    %v432 = vadd.f32 0.0, %v431
    %v433 = vpop.f32.mrf.mxu0
    %v434 = vadd.f32 0.0, %v433
    %v435 = vpop.f32.mrf.mxu0
    %v436 = vpop.f32.mrf.mxu0
    %437 = vdwg.mxu0
    %v438 = vadd.f32 %v388, %v432
    %v439 = vadd.f32 %v389, %v434
    %v440 = vxor.u32 %v438, 2147483648
    %v441 = vmul.f32 %v440, 1.442695
    %v442 = vpow.pop %v441
    %v443 = vadd.f32 %v442, 1.0
    %v444 = vrcp.pop %v443
    %v445 = vmul.f32 1.0, %v444
    %v446 = vtanh.pop %v439
    %v447 = vmul.f32 %v445, %v372
    %v448 = vmul.f32 %v445, %v446
    %450 = vrot.lane.b32.xlu0 %v448, 64
    %v451 = vpop.permute.xlu0 %450
    %v453 = vadd.f32 %v447, %v451
    %v454 = vxor.u32 %v439, 2147483648
    %v455 = vmul.f32 %v454, 1.442695
    %v456 = vpow.pop %v455
    %v457 = vadd.f32 %v456, 1.0
    %v458 = vrcp.pop %v457
    %v459 = vmul.f32 1.0, %v458
    %v460 = vtanh.pop %v453
    %v461 = vmul.f32 %v459, %v460
    %463 = vrot.lane.b32.xlu0 %v461, 64
    %v464 = vpop.permute.xlu0 %463
    %s466 = scalar_lea.vmem [#allocation3], 16
    %467 = vst.msk [vmem:[%s466] sm:$0xff] %vm232, %v464
    %s468 = scalar_lea.vmem [#allocation2], 48
    %v469 = vld [vmem:[%s468] sm:$0xff]
    %v470 = vld [vmem:[%s468 + $0x8] sm:$0xff]
    %v471 = vpack.c.bf16 %v461, %v461
    %473 = vrot.lane.b32.xlu0 %v471, 64
    %v474 = vpop.permute.xlu0 %473
    %v476 = vsel %vm232, %v474, 0
    %478 = vmatprep.subr.bf16.mxu0 0
    %479 = vmatpush1.bf16.msra.mxu0 0
    %480 = vmatprep.subr.bf16.mxu0 0
    %481 = vmatpush1.bf16.msra.mxu0 0
    %482 = vmatprep.subr.bf16.mxu0 0
    %483 = vmatpush1.bf16.msra.mxu0 0
    %484 = vmatprep.subr.bf16.mxu0 0
    %485 = vmatpush1.bf16.msra.mxu0 0
    %486 = vmatprep.subr.bf16.mxu0 %v223
    %487 = vmatpush1.bf16.msra.mxu0 %v222
    %488 = vmatprep.subr.bf16.mxu0 %v221
    %489 = vmatpush1.bf16.msra.mxu0 %v220
    %490 = vmatprep.subr.bf16.mxu0 %v219
    %491 = vmatpush1.bf16.msra.mxu0 %v218
    %492 = vmatprep.subr.bf16.mxu0 %v217
    %493 = vmatpush1.bf16.msra.mxu0 %v216
    %494 = vmatprep.subr.bf16.mxu0 0
    %495 = vmatpush2.bf16.msra.mxu0 0
    %496 = vmatprep.subr.bf16.mxu0 0
    %497 = vmatpush2.bf16.msra.mxu0 0
    %498 = vmatprep.subr.bf16.mxu0 0
    %499 = vmatpush2.bf16.msra.mxu0 0
    %500 = vmatprep.subr.bf16.mxu0 0
    %501 = vmatpush2.bf16.msra.mxu0 0
    %502 = vmatprep.subr.bf16.mxu0 0
    %503 = vmatpush2.bf16.msra.mxu0 0
    %504 = vmatprep.subr.bf16.mxu0 0
    %505 = vmatpush2.bf16.msra.mxu0 0
    %506 = vmatprep.subr.bf16.mxu0 0
    %507 = vmatpush2.bf16.msra.mxu0 0
    %508 = vmatprep.subr.bf16.mxu0 0
    %509 = vmatpush2.bf16.msra.mxu0 0
    %510 = vmatprep.mubr.bf16.mxu0 0
    %511 = vmatmul.mubr.bf16.gmra.mxu0 %v476
    %v512 = vpop.f32.mrf.mxu0
    %v513 = vadd.f32 0.0, %v512
    %v514 = vpop.f32.mrf.mxu0
    %v515 = vadd.f32 0.0, %v514
    %v516 = vpop.f32.mrf.mxu0
    %v517 = vpop.f32.mrf.mxu0
    %518 = vdwg.mxu0
    %v519 = vadd.f32 %v469, %v513
    %v520 = vadd.f32 %v470, %v515
    %v521 = vxor.u32 %v519, 2147483648
    %v522 = vmul.f32 %v521, 1.442695
    %v523 = vpow.pop %v522
    %v524 = vadd.f32 %v523, 1.0
    %v525 = vrcp.pop %v524
    %v526 = vmul.f32 1.0, %v525
    %v527 = vtanh.pop %v520
    %v528 = vmul.f32 %v526, %v453
    %v529 = vmul.f32 %v526, %v527
    %531 = vrot.lane.b32.xlu0 %v529, 64
    %v532 = vpop.permute.xlu0 %531
    %v534 = vadd.f32 %v528, %v532
    %v535 = vxor.u32 %v520, 2147483648
    %v536 = vmul.f32 %v535, 1.442695
    %v537 = vpow.pop %v536
    %v538 = vadd.f32 %v537, 1.0
    %v539 = vrcp.pop %v538
    %v540 = vmul.f32 1.0, %v539
    %v541 = vtanh.pop %v534
    %v542 = vmul.f32 %v540, %v541
    %544 = vrot.lane.b32.xlu0 %v542, 64
    %v545 = vpop.permute.xlu0 %544
    %s547 = scalar_lea.vmem [#allocation3], 24
    %548 = vst.msk [vmem:[%s547] sm:$0xff] %vm232, %v545
    %s549 = scalar_lea.vmem [#allocation2], 64
    %v550 = vld [vmem:[%s549] sm:$0xff]
    %v551 = vld [vmem:[%s549 + $0x8] sm:$0xff]
    %v552 = vpack.c.bf16 %v542, %v542
    %554 = vrot.lane.b32.xlu0 %v552, 64
    %v555 = vpop.permute.xlu0 %554
    %v557 = vsel %vm232, %v555, 0
    %559 = vmatprep.subr.bf16.mxu0 0
    %560 = vmatpush1.bf16.msra.mxu0 0
    %561 = vmatprep.subr.bf16.mxu0 0
    %562 = vmatpush1.bf16.msra.mxu0 0
    %563 = vmatprep.subr.bf16.mxu0 0
    %564 = vmatpush1.bf16.msra.mxu0 0
    %565 = vmatprep.subr.bf16.mxu0 0
    %566 = vmatpush1.bf16.msra.mxu0 0
    %567 = vmatprep.subr.bf16.mxu0 %v223
    %568 = vmatpush1.bf16.msra.mxu0 %v222
    %569 = vmatprep.subr.bf16.mxu0 %v221
    %570 = vmatpush1.bf16.msra.mxu0 %v220
    %571 = vmatprep.subr.bf16.mxu0 %v219
    %572 = vmatpush1.bf16.msra.mxu0 %v218
    %573 = vmatprep.subr.bf16.mxu0 %v217
    %574 = vmatpush1.bf16.msra.mxu0 %v216
    %575 = vmatprep.subr.bf16.mxu0 0
    %576 = vmatpush2.bf16.msra.mxu0 0
    %577 = vmatprep.subr.bf16.mxu0 0
    %578 = vmatpush2.bf16.msra.mxu0 0
    %579 = vmatprep.subr.bf16.mxu0 0
    %580 = vmatpush2.bf16.msra.mxu0 0
    %581 = vmatprep.subr.bf16.mxu0 0
    %582 = vmatpush2.bf16.msra.mxu0 0
    %583 = vmatprep.subr.bf16.mxu0 0
    %584 = vmatpush2.bf16.msra.mxu0 0
    %585 = vmatprep.subr.bf16.mxu0 0
    %586 = vmatpush2.bf16.msra.mxu0 0
    %587 = vmatprep.subr.bf16.mxu0 0
    %588 = vmatpush2.bf16.msra.mxu0 0
    %589 = vmatprep.subr.bf16.mxu0 0
    %590 = vmatpush2.bf16.msra.mxu0 0
    %591 = vmatprep.mubr.bf16.mxu0 0
    %592 = vmatmul.mubr.bf16.gmra.mxu0 %v557
    %v593 = vpop.f32.mrf.mxu0
    %v594 = vadd.f32 0.0, %v593
    %v595 = vpop.f32.mrf.mxu0
    %v596 = vadd.f32 0.0, %v595
    %v597 = vpop.f32.mrf.mxu0
    %v598 = vpop.f32.mrf.mxu0
    %599 = vdwg.mxu0
    %v600 = vadd.f32 %v550, %v594
    %v601 = vadd.f32 %v551, %v596
    %v602 = vxor.u32 %v600, 2147483648
    %v603 = vmul.f32 %v602, 1.442695
    %v604 = vpow.pop %v603
    %v605 = vadd.f32 %v604, 1.0
    %v606 = vrcp.pop %v605
    %v607 = vmul.f32 1.0, %v606
    %v608 = vtanh.pop %v601
    %v609 = vmul.f32 %v607, %v534
    %v610 = vmul.f32 %v607, %v608
    %612 = vrot.lane.b32.xlu0 %v610, 64
    %v613 = vpop.permute.xlu0 %612
    %v615 = vadd.f32 %v609, %v613
    %v616 = vxor.u32 %v601, 2147483648
    %v617 = vmul.f32 %v616, 1.442695
    %v618 = vpow.pop %v617
    %v619 = vadd.f32 %v618, 1.0
    %v620 = vrcp.pop %v619
    %v621 = vmul.f32 1.0, %v620
    %v622 = vtanh.pop %v615
    %v623 = vmul.f32 %v621, %v622
    %625 = vrot.lane.b32.xlu0 %v623, 64
    %v626 = vpop.permute.xlu0 %625
    %s628 = scalar_lea.vmem [#allocation3], 32
    %629 = vst.msk [vmem:[%s628] sm:$0xff] %vm232, %v626
    %s630 = scalar_lea.vmem [#allocation2], 80
    %v631 = vld [vmem:[%s630] sm:$0xff]
    %v632 = vld [vmem:[%s630 + $0x8] sm:$0xff]
    %v633 = vpack.c.bf16 %v623, %v623
    %635 = vrot.lane.b32.xlu0 %v633, 64
    %v636 = vpop.permute.xlu0 %635
    %v638 = vsel %vm232, %v636, 0
    %640 = vmatprep.subr.bf16.mxu0 0
    %641 = vmatpush1.bf16.msra.mxu0 0
    %642 = vmatprep.subr.bf16.mxu0 0
    %643 = vmatpush1.bf16.msra.mxu0 0
    %644 = vmatprep.subr.bf16.mxu0 0
    %645 = vmatpush1.bf16.msra.mxu0 0
    %646 = vmatprep.subr.bf16.mxu0 0
    %647 = vmatpush1.bf16.msra.mxu0 0
    %648 = vmatprep.subr.bf16.mxu0 %v223
    %649 = vmatpush1.bf16.msra.mxu0 %v222
    %650 = vmatprep.subr.bf16.mxu0 %v221
    %651 = vmatpush1.bf16.msra.mxu0 %v220
    %652 = vmatprep.subr.bf16.mxu0 %v219
    %653 = vmatpush1.bf16.msra.mxu0 %v218
    %654 = vmatprep.subr.bf16.mxu0 %v217
    %655 = vmatpush1.bf16.msra.mxu0 %v216
    %656 = vmatprep.subr.bf16.mxu0 0
    %657 = vmatpush2.bf16.msra.mxu0 0
    %658 = vmatprep.subr.bf16.mxu0 0
    %659 = vmatpush2.bf16.msra.mxu0 0
    %660 = vmatprep.subr.bf16.mxu0 0
    %661 = vmatpush2.bf16.msra.mxu0 0
    %662 = vmatprep.subr.bf16.mxu0 0
    %663 = vmatpush2.bf16.msra.mxu0 0
    %664 = vmatprep.subr.bf16.mxu0 0
    %665 = vmatpush2.bf16.msra.mxu0 0
    %666 = vmatprep.subr.bf16.mxu0 0
    %667 = vmatpush2.bf16.msra.mxu0 0
    %668 = vmatprep.subr.bf16.mxu0 0
    %669 = vmatpush2.bf16.msra.mxu0 0
    %670 = vmatprep.subr.bf16.mxu0 0
    %671 = vmatpush2.bf16.msra.mxu0 0
    %672 = vmatprep.mubr.bf16.mxu0 0
    %673 = vmatmul.mubr.bf16.gmra.mxu0 %v638
    %v674 = vpop.f32.mrf.mxu0
    %v675 = vadd.f32 0.0, %v674
    %v676 = vpop.f32.mrf.mxu0
    %v677 = vadd.f32 0.0, %v676
    %v678 = vpop.f32.mrf.mxu0
    %v679 = vpop.f32.mrf.mxu0
    %680 = vdwg.mxu0
    %v681 = vadd.f32 %v631, %v675
    %v682 = vadd.f32 %v632, %v677
    %v683 = vxor.u32 %v681, 2147483648
    %v684 = vmul.f32 %v683, 1.442695
    %v685 = vpow.pop %v684
    %v686 = vadd.f32 %v685, 1.0
    %v687 = vrcp.pop %v686
    %v688 = vmul.f32 1.0, %v687
    %v689 = vtanh.pop %v682
    %v690 = vmul.f32 %v688, %v615
    %v691 = vmul.f32 %v688, %v689
    %693 = vrot.lane.b32.xlu0 %v691, 64
    %v694 = vpop.permute.xlu0 %693
    %v696 = vadd.f32 %v690, %v694
    %v697 = vxor.u32 %v682, 2147483648
    %v698 = vmul.f32 %v697, 1.442695
    %v699 = vpow.pop %v698
    %v700 = vadd.f32 %v699, 1.0
    %v701 = vrcp.pop %v700
    %v702 = vmul.f32 1.0, %v701
    %v703 = vtanh.pop %v696
    %v704 = vmul.f32 %v702, %v703
    %706 = vrot.lane.b32.xlu0 %v704, 64
    %v707 = vpop.permute.xlu0 %706
    %s709 = scalar_lea.vmem [#allocation3], 40
    %710 = vst.msk [vmem:[%s709] sm:$0xff] %vm232, %v707
    %s711 = scalar_lea.vmem [#allocation2], 96
    %v712 = vld [vmem:[%s711] sm:$0xff]
    %v713 = vld [vmem:[%s711 + $0x8] sm:$0xff]
    %v714 = vpack.c.bf16 %v704, %v704
    %716 = vrot.lane.b32.xlu0 %v714, 64
    %v717 = vpop.permute.xlu0 %716
    %v719 = vsel %vm232, %v717, 0
    %721 = vmatprep.subr.bf16.mxu0 0
    %722 = vmatpush1.bf16.msra.mxu0 0
    %723 = vmatprep.subr.bf16.mxu0 0
    %724 = vmatpush1.bf16.msra.mxu0 0
    %725 = vmatprep.subr.bf16.mxu0 0
    %726 = vmatpush1.bf16.msra.mxu0 0
    %727 = vmatprep.subr.bf16.mxu0 0
    %728 = vmatpush1.bf16.msra.mxu0 0
    %729 = vmatprep.subr.bf16.mxu0 %v223
    %730 = vmatpush1.bf16.msra.mxu0 %v222
    %731 = vmatprep.subr.bf16.mxu0 %v221
    %732 = vmatpush1.bf16.msra.mxu0 %v220
    %733 = vmatprep.subr.bf16.mxu0 %v219
    %734 = vmatpush1.bf16.msra.mxu0 %v218
    %735 = vmatprep.subr.bf16.mxu0 %v217
    %736 = vmatpush1.bf16.msra.mxu0 %v216
    %737 = vmatprep.subr.bf16.mxu0 0
    %738 = vmatpush2.bf16.msra.mxu0 0
    %739 = vmatprep.subr.bf16.mxu0 0
    %740 = vmatpush2.bf16.msra.mxu0 0
    %741 = vmatprep.subr.bf16.mxu0 0
    %742 = vmatpush2.bf16.msra.mxu0 0
    %743 = vmatprep.subr.bf16.mxu0 0
    %744 = vmatpush2.bf16.msra.mxu0 0
    %745 = vmatprep.subr.bf16.mxu0 0
    %746 = vmatpush2.bf16.msra.mxu0 0
    %747 = vmatprep.subr.bf16.mxu0 0
    %748 = vmatpush2.bf16.msra.mxu0 0
    %749 = vmatprep.subr.bf16.mxu0 0
    %750 = vmatpush2.bf16.msra.mxu0 0
    %751 = vmatprep.subr.bf16.mxu0 0
    %752 = vmatpush2.bf16.msra.mxu0 0
    %753 = vmatprep.mubr.bf16.mxu0 0
    %754 = vmatmul.mubr.bf16.gmra.mxu0 %v719
    %v755 = vpop.f32.mrf.mxu0
    %v756 = vadd.f32 0.0, %v755
    %v757 = vpop.f32.mrf.mxu0
    %v758 = vadd.f32 0.0, %v757
    %v759 = vpop.f32.mrf.mxu0
    %v760 = vpop.f32.mrf.mxu0
    %761 = vdwg.mxu0
    %v762 = vadd.f32 %v712, %v756
    %v763 = vadd.f32 %v713, %v758
    %v764 = vxor.u32 %v762, 2147483648
    %v765 = vmul.f32 %v764, 1.442695
    %v766 = vpow.pop %v765
    %v767 = vadd.f32 %v766, 1.0
    %v768 = vrcp.pop %v767
    %v769 = vmul.f32 1.0, %v768
    %v770 = vtanh.pop %v763
    %v771 = vmul.f32 %v769, %v696
    %v772 = vmul.f32 %v769, %v770
    %774 = vrot.lane.b32.xlu0 %v772, 64
    %v775 = vpop.permute.xlu0 %774
    %v777 = vadd.f32 %v771, %v775
    %v778 = vxor.u32 %v763, 2147483648
    %v779 = vmul.f32 %v778, 1.442695
    %v780 = vpow.pop %v779
    %v781 = vadd.f32 %v780, 1.0
    %v782 = vrcp.pop %v781
    %v783 = vmul.f32 1.0, %v782
    %v784 = vtanh.pop %v777
    %v785 = vmul.f32 %v783, %v784
    %787 = vrot.lane.b32.xlu0 %v785, 64
    %v788 = vpop.permute.xlu0 %787
    %s790 = scalar_lea.vmem [#allocation3], 48
    %791 = vst.msk [vmem:[%s790] sm:$0xff] %vm232, %v788
    %s792 = scalar_lea.vmem [#allocation2], 112
    %v793 = vld [vmem:[%s792] sm:$0xff]
    %v794 = vld [vmem:[%s792 + $0x8] sm:$0xff]
    %v795 = vpack.c.bf16 %v785, %v785
    %797 = vrot.lane.b32.xlu0 %v795, 64
    %v798 = vpop.permute.xlu0 %797
    %v800 = vsel %vm232, %v798, 0
    %802 = vmatprep.subr.bf16.mxu0 0
    %803 = vmatpush1.bf16.msra.mxu0 0
    %804 = vmatprep.subr.bf16.mxu0 0
    %805 = vmatpush1.bf16.msra.mxu0 0
    %806 = vmatprep.subr.bf16.mxu0 0
    %807 = vmatpush1.bf16.msra.mxu0 0
    %808 = vmatprep.subr.bf16.mxu0 0
    %809 = vmatpush1.bf16.msra.mxu0 0
    %810 = vmatprep.subr.bf16.mxu0 %v223
    %811 = vmatpush1.bf16.msra.mxu0 %v222
    %812 = vmatprep.subr.bf16.mxu0 %v221
    %813 = vmatpush1.bf16.msra.mxu0 %v220
    %814 = vmatprep.subr.bf16.mxu0 %v219
    %815 = vmatpush1.bf16.msra.mxu0 %v218
    %816 = vmatprep.subr.bf16.mxu0 %v217
    %817 = vmatpush1.bf16.msra.mxu0 %v216
    %818 = vmatprep.subr.bf16.mxu0 0
    %819 = vmatpush2.bf16.msra.mxu0 0
    %820 = vmatprep.subr.bf16.mxu0 0
    %821 = vmatpush2.bf16.msra.mxu0 0
    %822 = vmatprep.subr.bf16.mxu0 0
    %823 = vmatpush2.bf16.msra.mxu0 0
    %824 = vmatprep.subr.bf16.mxu0 0
    %825 = vmatpush2.bf16.msra.mxu0 0
    %826 = vmatprep.subr.bf16.mxu0 0
    %827 = vmatpush2.bf16.msra.mxu0 0
    %828 = vmatprep.subr.bf16.mxu0 0
    %829 = vmatpush2.bf16.msra.mxu0 0
    %830 = vmatprep.subr.bf16.mxu0 0
    %831 = vmatpush2.bf16.msra.mxu0 0
    %832 = vmatprep.subr.bf16.mxu0 0
    %833 = vmatpush2.bf16.msra.mxu0 0
    %834 = vmatprep.mubr.bf16.mxu0 0
    %835 = vmatmul.mubr.bf16.gmra.mxu0 %v800
    %v836 = vpop.f32.mrf.mxu0
    %v837 = vadd.f32 0.0, %v836
    %v838 = vpop.f32.mrf.mxu0
    %v839 = vadd.f32 0.0, %v838
    %v840 = vpop.f32.mrf.mxu0
    %v841 = vpop.f32.mrf.mxu0
    %842 = vdwg.mxu0
    %v843 = vadd.f32 %v793, %v837
    %v844 = vadd.f32 %v794, %v839
    %v845 = vxor.u32 %v843, 2147483648
    %v846 = vmul.f32 %v845, 1.442695
    %v847 = vpow.pop %v846
    %v848 = vadd.f32 %v847, 1.0
    %v849 = vrcp.pop %v848
    %v850 = vmul.f32 1.0, %v849
    %v851 = vtanh.pop %v844
    %v852 = vmul.f32 %v850, %v777
    %v853 = vmul.f32 %v850, %v851
    %855 = vrot.lane.b32.xlu0 %v853, 64
    %v856 = vpop.permute.xlu0 %855
    %v858 = vadd.f32 %v852, %v856
    %v859 = vxor.u32 %v844, 2147483648
    %v860 = vmul.f32 %v859, 1.442695
    %v861 = vpow.pop %v860
    %v862 = vadd.f32 %v861, 1.0
    %v863 = vrcp.pop %v862
    %v864 = vmul.f32 1.0, %v863
    %v865 = vtanh.pop %v858
    %v866 = vmul.f32 %v864, %v865
    %868 = vrot.lane.b32.xlu0 %v866, 64
    %v869 = vpop.permute.xlu0 %868
    %s871 = scalar_lea.vmem [#allocation3], 56
    %872 = vst.msk [vmem:[%s871] sm:$0xff] %vm232, %v869
    %v873 = vld [vmem:[#allocation3] sm:$0xff]
    %v874 = vld [vmem:[#allocation3 + $0x8] sm:$0xff]
    %v875 = vld [vmem:[#allocation3 + $0x10] sm:$0xff]
    %v876 = vld [vmem:[#allocation3 + $0x18] sm:$0xff]
    %v877 = vld [vmem:[#allocation3 + $0x20] sm:$0xff]
    %v878 = vld [vmem:[#allocation3 + $0x28] sm:$0xff]
    %v879 = vld [vmem:[#allocation3 + $0x30] sm:$0xff]
    %v880 = vld [vmem:[#allocation3 + $0x38] sm:$0xff]
    %v881 = vld [vmem:[%s4] sm:$0x1]
    %v883 = vlaneseq
    %v884 = vshrl.u32 %v883, 7
    %v885 = vsub.s32 0, %v884
    %v886 = vrot.slane %v881, %v885
    %v888 = vmul.f32 %v873, %v886
    %v889 = vmul.f32 %v874, %v886
    %v890 = vmul.f32 %v875, %v886
    %v891 = vmul.f32 %v876, %v886
    %v892 = vmul.f32 %v877, %v886
    %v893 = vmul.f32 %v878, %v886
    %v894 = vmul.f32 %v879, %v886
    %v895 = vmul.f32 %v880, %v886
    %v896 = vsel %vm232, %v888, 0.0
    %897 = vadd.xlane.f32.xlu0 %v896
    %v898 = vpop.xlane.xlu0 %897
    %v899 = vsel %vm232, %v889, 0.0
    %900 = vadd.xlane.f32.xlu0 %v899
    %v901 = vpop.xlane.xlu0 %900
    %v902 = vsel %vm232, %v890, 0.0
    %903 = vadd.xlane.f32.xlu0 %v902
    %v904 = vpop.xlane.xlu0 %903
    %v905 = vsel %vm232, %v891, 0.0
    %906 = vadd.xlane.f32.xlu0 %v905
    %v907 = vpop.xlane.xlu0 %906
    %v908 = vsel %vm232, %v892, 0.0
    %909 = vadd.xlane.f32.xlu0 %v908
    %v910 = vpop.xlane.xlu0 %909
    %v911 = vsel %vm232, %v893, 0.0
    %912 = vadd.xlane.f32.xlu0 %v911
    %v913 = vpop.xlane.xlu0 %912
    %v914 = vsel %vm232, %v894, 0.0
    %915 = vadd.xlane.f32.xlu0 %v914
    %v916 = vpop.xlane.xlu0 %915
    %v917 = vsel %vm232, %v895, 0.0
    %918 = vadd.xlane.f32.xlu0 %v917
    %v919 = vpop.xlane.xlu0 %918
    %v920 = vld [vmem:[#allocation4] sm:$0x1]
    %v922 = vlaneseq
    %v923 = vshrl.u32 %v922, 7
    %v924 = vsub.s32 0, %v923
    %v925 = vrot.slane %v920, %v924
    %926 = vset.pattern.permute.xlu0 0
    %927 = vperm.xlu0 %926, %v925
    %v928 = vpop.permute.xlu0 %927
    %v930 = vadd.f32 %v898, %v928
    %v931 = vadd.f32 %v901, %v928
    %v932 = vadd.f32 %v904, %v928
    %v933 = vadd.f32 %v907, %v928
    %v934 = vadd.f32 %v910, %v928
    %v935 = vadd.f32 %v913, %v928
    %v936 = vadd.f32 %v916, %v928
    %v937 = vadd.f32 %v919, %v928
    %v946 = vlaneseq
    %v947 = vand.u32 %v946, 127
    %v948 = vlaneseq
    %v949 = vshrl.u32 %v948, 7
    %v950 = vsub.s32 %v947, %v949
    %v951 = vrot.slane %v930, %v950
    %v952 = vlaneseq
    %v953 = vshrl.u32 %v952, 7
    %v954 = vsub.s32 %v947, %v953
    %v955 = vrot.slane %v931, %v954
    %v956 = vlaneseq
    %v957 = vshrl.u32 %v956, 7
    %v958 = vsub.s32 %v947, %v957
    %v959 = vrot.slane %v932, %v958
    %v960 = vlaneseq
    %v961 = vshrl.u32 %v960, 7
    %v962 = vsub.s32 %v947, %v961
    %v963 = vrot.slane %v933, %v962
    %v964 = vlaneseq
    %v965 = vshrl.u32 %v964, 7
    %v966 = vsub.s32 %v947, %v965
    %v967 = vrot.slane %v934, %v966
    %v968 = vlaneseq
    %v969 = vshrl.u32 %v968, 7
    %v970 = vsub.s32 %v947, %v969
    %v971 = vrot.slane %v935, %v970
    %v972 = vlaneseq
    %v973 = vshrl.u32 %v972, 7
    %v974 = vsub.s32 %v947, %v973
    %v975 = vrot.slane %v936, %v974
    %v976 = vlaneseq
    %v977 = vshrl.u32 %v976, 7
    %v978 = vsub.s32 %v947, %v977
    %v979 = vrot.slane %v937, %v978
    %vm980 = vcmask 1041409
    %v981 = vsel %vm980, %v955, %v951
    %vm982 = vcmask 1042434
    %v983 = vsel %vm982, %v959, %v981
    %vm984 = vcmask 1043459
    %v985 = vsel %vm984, %v963, %v983
    %vm986 = vcmask 1044484
    %v987 = vsel %vm986, %v967, %v985
    %vm988 = vcmask 1045509
    %v989 = vsel %vm988, %v971, %v987
    %vm990 = vcmask 1046534
    %v991 = vsel %vm990, %v975, %v989
    %vm992 = vcmask 1047559
    %v993 = vsel %vm992, %v979, %v991
    %vm995 = vcmask 64512
    %996 = vst.msk [vmem:[#allocation10] sm:$0xff] %vm995, %v993
    // Predicated region
    $region34: #{tpu_custom_call.1} parent=1 // pred_check
      _
    $region35: #{tpu_custom_call.1} parent=1 // pred_check_branch
      %998 = sbr.rel (0) target = $region37
    $region36: #{tpu_custom_call.1} parent=1 // pred_region
      %s1000 = ssub.s32 128, 128
      %1001 = vsyncadd [#allocation7], %s1000
      %s1003 = sshll.u32 [#allocation10], 4
      %s1004 = int_to_ptr.vmem [resolvable:$true] %s1003
      %1006 = dma.vmem_to_hbm [thread:$0]  %s1004, 128, %s6, [#allocation7]
    $region37: #{tpu_custom_call.1} parent=1 // pred_fallthru
      _
    // Predicated region
    $region38: #{tpu_custom_call.1} parent=1 // pred_check
      _
    $region39: #{tpu_custom_call.1} parent=1 // pred_check_branch
      %1008 = sbr.rel (0) target = $region41
    $region40: #{tpu_custom_call.1} parent=1 // pred_region
      %1009 = dma.done [#allocation7], 128
    $region41: #{tpu_custom_call.1} parent=1 // pred_fallthru
      _
    %1010 = vsyncpa [#allocation6], 1
    %1011 = vsyncpa [#allocation9], 1
    %1012 = vsyncpa [#allocation7], 1

</llo_original>
